<compile_context>
chip_gen: v5e
topology: v5e:2x2
jax: 0.10.0
libtpu: 0.0.40
codegen_flags: <defaults>
</compile_context>

<pallas_src>
import jax
import jax.numpy as jnp
from jax.experimental import pallas as pl
from jax.experimental.pallas import tpu as pltpu


def _round_up(n, m):
    return ((n + m - 1) // m) * m


def _lstm_fc_kernel(x_ref, wih_ref, whh_ref, b_ref, wfc_ref, bfc_ref,
                    out_ref, gx_sc):
    """Shapes:
       x_ref:  (T*Bp, I)  bf16     wih_ref: (I, 4*Hp)  bf16
       whh_ref:(Hp, 4*Hp) bf16     b_ref:   (1, 4*Hp)  f32
       wfc_ref:(Hp, Op)   bf16     bfc_ref: (1, Op)    f32
       out_ref:(Bp, Op)   f32      gx_sc:   (T*Bp, 4*Hp) f32 scratch
    """
    Bp = out_ref.shape[0]
    Hp = whh_ref.shape[0]
    T = x_ref.shape[0] // Bp                      # static

    # Phase 1: input projection for ALL timesteps in one big MXU matmul
    # (bf16 operands, f32 accumulation), parked in VMEM scratch.
    # TODO(synk): at production T, chunk this into per-timestep-block matmuls
    # writing disjoint gx_sc row slices (and stream x from HBM double-buffered)
    # so it overlaps the recurrence and fits v7x's 64 MiB VMEM.
    gx_sc[...] = (jnp.dot(x_ref[...], wih_ref[...],
                          preferred_element_type=jnp.float32) + b_ref[...])

    h0 = jnp.zeros((Bp, Hp), jnp.float32)
    c0 = jnp.zeros((Bp, Hp), jnp.float32)

    # Phase 2: serial recurrence. h/c live in vregs as loop carries; only the
    # (bf16) h @ W_hh matmul + gx add + gate math is on the critical path.
    def step(t, carry):
        h, c = carry
        row = pl.multiple_of(t * Bp, Bp)          # sublane-aligned row offset
        gates = gx_sc[pl.ds(row, Bp), :] + jnp.dot(
            h.astype(jnp.bfloat16), whh_ref[...],
            preferred_element_type=jnp.float32)
        # 128-lane-aligned per-gate windows (Hp is a multiple of 128).
        i_g = jax.nn.sigmoid(gates[:, 0 * Hp:1 * Hp])
        f_g = jax.nn.sigmoid(gates[:, 1 * Hp:2 * Hp])
        g_g = jnp.tanh(gates[:, 2 * Hp:3 * Hp])
        o_g = jax.nn.sigmoid(gates[:, 3 * Hp:4 * Hp])
        c_new = f_g * c + i_g * g_g
        h_new = o_g * jnp.tanh(c_new)
        return (h_new, c_new)

    unroll = True if T <= 16 else 8               # partial unroll for long T
    h_fin, _ = jax.lax.fori_loop(0, T, step, (h0, c0), unroll=unroll)

    # Phase 3: final Linear on the last hidden state; lane-dense output store.
    out_ref[...] = (jnp.dot(h_fin.astype(jnp.bfloat16), wfc_ref[...],
                            preferred_element_type=jnp.float32)
                    + bfc_ref[...]).astype(out_ref.dtype)


def prepare_params(raw):
    """Pre-transpose + zero-pad PyTorch-layout LSTM/FC weights for the kernel.
    Matmul operands are stored in bf16; biases stay f32."""
    w_ih, w_hh = raw["w_ih"], raw["w_hh"]          # (4H, I), (4H, H)
    b = raw["b_ih"] + raw["b_hh"]                  # (4H,)
    w_fc, b_fc = raw["w_fc"], raw["b_fc"]          # (O, H), (O,)
    H = w_hh.shape[1]
    I = w_ih.shape[1]
    O = w_fc.shape[0]
    Hp = _round_up(H, 128)
    Op = _round_up(O, 128)
    wih_t = w_ih.T                                 # (I, 4H)
    whh_t = w_hh.T                                 # (H, 4H)
    wih_p = jnp.zeros((I, 4 * Hp), jnp.float32)
    whh_p = jnp.zeros((Hp, 4 * Hp), jnp.float32)
    b_p = jnp.zeros((1, 4 * Hp), jnp.float32)
    for g in range(4):                             # PyTorch gate order [i,f,g,o]
        wih_p = wih_p.at[:, g * Hp:g * Hp + H].set(wih_t[:, g * H:(g + 1) * H])
        whh_p = whh_p.at[:H, g * Hp:g * Hp + H].set(whh_t[:, g * H:(g + 1) * H])
        b_p = b_p.at[0, g * Hp:g * Hp + H].set(b[g * H:(g + 1) * H])
    wfc_p = jnp.zeros((Hp, Op), jnp.float32).at[:H, :O].set(w_fc.T)
    bfc_p = jnp.zeros((1, Op), jnp.float32).at[0, :O].set(b_fc)
    return {"wih_p": wih_p.astype(jnp.bfloat16),
            "whh_p": whh_p.astype(jnp.bfloat16),
            "wfc_p": wfc_p.astype(jnp.bfloat16),
            "b_p": b_p, "bfc_p": bfc_p,
            "H": H, "Hp": Hp, "O": O, "Op": Op}


def asm_generator_rnn_forward(x, params):
    """x: (B, T, input_size) float32 -> (B, output_size) float32."""
    B, T, I = x.shape
    Hp, Op, O = params["Hp"], params["Op"], params["O"]
    Bp = _round_up(max(B, 8), 8)                   # pad batch to f32 sublanes

    # Single transpose + pad: (B, T, I) -> (T, Bp, I) -> (T*Bp, I).
    # Timestep t lives in rows [t*Bp, (t+1)*Bp), a contiguous sublane block.
    x_t = jnp.swapaxes(x, 0, 1).astype(jnp.bfloat16)          # (T, B, I)
    x2d = jnp.pad(x_t, ((0, 0), (0, Bp - B), (0, 0))).reshape(T * Bp, I)

    def vmem_spec():
        return pl.BlockSpec(memory_space=pltpu.MemorySpace.VMEM)

    out_p = pl.pallas_call(
        _lstm_fc_kernel,
        out_shape=jax.ShapeDtypeStruct((Bp, Op), jnp.float32),
        in_specs=[vmem_spec() for _ in range(6)],
        out_specs=vmem_spec(),
        scratch_shapes=[
            pltpu.VMEM((T * Bp, 4 * Hp), jnp.float32),   # gates_x, all steps
        ],
        compiler_params=pltpu.CompilerParams(
            vmem_limit_bytes=32 * 1024 * 1024),
    )(x2d, params["wih_p"], params["whh_p"], params["b_p"],
      params["wfc_p"], params["bfc_p"])
    # TODO(synk): for production batch sizes, add a leading "parallel" batch
    # grid axis (each block an independent recurrence) to use v7x's second
    # TensorCore; for 4*H <= 128 a packed-gate layout (one 128-lane gate block
    # + pltpu.roll alignment) would further cut per-step MXU pushes.
    return out_p[:B, :O]


def init_params(key, input_size, hidden_size, output_size):
    """Deterministic init mimicking PyTorch's U(-1/sqrt(H), 1/sqrt(H))."""
    ks = jax.random.split(key, 6)
    bound = 1.0 / jnp.sqrt(jnp.float32(hidden_size))
    u = lambda k, shape: jax.random.uniform(k, shape, jnp.float32, -bound, bound)
    raw = {
        "w_ih": u(ks[0], (4 * hidden_size, input_size)),
        "w_hh": u(ks[1], (4 * hidden_size, hidden_size)),
        "b_ih": u(ks[2], (4 * hidden_size,)),
        "b_hh": u(ks[3], (4 * hidden_size,)),
        "w_fc": u(ks[4], (output_size, hidden_size)),
        "b_fc": u(ks[5], (output_size,)),
    }
    return raw, prepare_params(raw)


def reference_forward(x, raw):
    """Pure-JAX f32 reference of the PyTorch forward pass (for verification)."""
    H = raw["w_hh"].shape[1]
    wih_t = raw["w_ih"].T
    whh_t = raw["w_hh"].T
    b = (raw["b_ih"] + raw["b_hh"])[None, :]

    def step(carry, xt):
        h, c = carry
        gates = xt @ wih_t + h @ whh_t + b
        i_g = jax.nn.sigmoid(gates[:, 0 * H:1 * H])
        f_g = jax.nn.sigmoid(gates[:, 1 * H:2 * H])
        g_g = jnp.tanh(gates[:, 2 * H:3 * H])
        o_g = jax.nn.sigmoid(gates[:, 3 * H:4 * H])
        c = f_g * c + i_g * g_g
        h = o_g * jnp.tanh(c)
        return (h, c), None

    B = x.shape[0]
    h0 = jnp.zeros((B, H), jnp.float32)
    c0 = jnp.zeros((B, H), jnp.float32)
    (h, _), _ = jax.lax.scan(step, (h0, c0), jnp.swapaxes(x, 0, 1))
    return h @ raw["w_fc"].T + raw["b_fc"][None, :]


if __name__ == "__main__":
    B, T, INPUT, HIDDEN, OUTPUT = 2, 8, 16, 32, 16

    key = jax.random.PRNGKey(0)
    kx, kp = jax.random.split(key)
    x = jax.random.normal(kx, (B, T, INPUT), jnp.float32)
    raw, params = init_params(kp, INPUT, HIDDEN, OUTPUT)

    out = asm_generator_rnn_forward(x, params)
    out = jax.block_until_ready(out)

    ref = reference_forward(x, raw)
    assert out.shape == (B, OUTPUT)
    err = jnp.max(jnp.abs(out - ref))
    # Tolerance relaxed vs. a pure-f32 kernel: MXU operands are bf16
    # (f32 accumulation), and the rounding compounds over the T-step recurrence.
    assert jnp.allclose(out, ref, atol=5e-2, rtol=5e-2), f"max err {err}"

    print("KERNEL_OK")
</pallas_src>

<mosaic_0001>
module attributes {stable_mosaic.version = 11 : i64} {
  func.func @_lstm_fc_kernel(%arg0: memref<64x16xbf16, #tpu.memory_space<vmem>>, %arg1: memref<16x512xbf16, #tpu.memory_space<vmem>>, %arg2: memref<128x512xbf16, #tpu.memory_space<vmem>>, %arg3: memref<1x512xf32, #tpu.memory_space<vmem>>, %arg4: memref<128x128xbf16, #tpu.memory_space<vmem>>, %arg5: memref<1x128xf32, #tpu.memory_space<vmem>>, %arg6: memref<8x128xf32, #tpu.memory_space<vmem>>, %arg7: memref<64x512xf32, #tpu.memory_space<vmem>>) attributes {dimension_semantics = [], scalar_prefetch = 0 : i64, scratch_operands = 1 : i64, tpu.core_type = #tpu.core_type<tc>} {
    %c0 = arith.constant 0 : index
    %c0_0 = arith.constant 0 : index
    %0 = vector.load %arg0[%c0, %c0_0] : memref<64x16xbf16, #tpu.memory_space<vmem>>, vector<64x16xbf16>
    %c0_1 = arith.constant 0 : index
    %c0_2 = arith.constant 0 : index
    %1 = vector.load %arg1[%c0_1, %c0_2] : memref<16x512xbf16, #tpu.memory_space<vmem>>, vector<16x512xbf16>
    %cst = arith.constant dense<0.000000e+00> : vector<64x512xf32>
    %2 = tpu.matmul %0, %1, %cst {dimension_numbers = #tpu.dot_dimension_numbers<[1], [0], [0], [1], [0, 0, 1, 1], [], []>} : vector<64x16xbf16>, vector<16x512xbf16>, vector<64x512xf32> -> vector<64x512xf32>
    %c0_3 = arith.constant 0 : index
    %c0_4 = arith.constant 0 : index
    %3 = vector.load %arg3[%c0_3, %c0_4] : memref<1x512xf32, #tpu.memory_space<vmem>>, vector<1x512xf32>
    %4 = vector.broadcast %3 : vector<1x512xf32> to vector<64x512xf32>
    %5 = arith.addf %2, %4 : vector<64x512xf32>
    %c0_5 = arith.constant 0 : index
    %c0_6 = arith.constant 0 : index
    %6 = vector.load %arg7[%c0_5, %c0_6] : memref<64x512xf32, #tpu.memory_space<vmem>>, vector<64x512xf32>
    tpu.vector_store %arg7[%c0_5, %c0_6], %5 {strides = array<i32>} : memref<64x512xf32, #tpu.memory_space<vmem>>, vector<64x512xf32>,
    %cst_7 = arith.constant 0.000000e+00 : f32
    %7 = vector.broadcast %cst_7 : f32 to vector<8x128xf32>
    %cst_8 = arith.constant 0.000000e+00 : f32
    %8 = vector.broadcast %cst_8 : f32 to vector<8x128xf32>
    %c0_i32 = arith.constant 0 : i32
    %c8_i32 = arith.constant 8 : i32
    %9 = arith.muli %c0_i32, %c8_i32 : i32
    %10 = tpu.assume_multiple %9, 8 : i32
    %11 = arith.index_cast %10 : i32 to index
    %c0_9 = arith.constant 0 : index
    %12 = vector.load %arg7[%11, %c0_9] : memref<64x512xf32, #tpu.memory_space<vmem>>, vector<8x512xf32>
    %13 = arith.truncf %7 : vector<8x128xf32> to vector<8x128xbf16>
    %c0_10 = arith.constant 0 : index
    %c0_11 = arith.constant 0 : index
    %14 = vector.load %arg2[%c0_10, %c0_11] : memref<128x512xbf16, #tpu.memory_space<vmem>>, vector<128x512xbf16>
    %cst_12 = arith.constant dense<0.000000e+00> : vector<8x512xf32>
    %15 = tpu.matmul %13, %14, %cst_12 {dimension_numbers = #tpu.dot_dimension_numbers<[1], [0], [0], [1], [0, 0, 1, 1], [], []>} : vector<8x128xbf16>, vector<128x512xbf16>, vector<8x512xf32> -> vector<8x512xf32>
    %16 = arith.addf %12, %15 : vector<8x512xf32>
    %17 = vector.extract_strided_slice %16 {offsets = [0, 0], sizes = [8, 128], strides = [1, 1]} : vector<8x512xf32> to vector<8x128xf32>
    %18 = arith.negf %17 : vector<8x128xf32>
    %19 = math.exp %18 : vector<8x128xf32>
    %cst_13 = arith.constant 1.000000e+00 : f32
    %20 = vector.broadcast %cst_13 : f32 to vector<8x128xf32>
    %21 = arith.addf %20, %19 : vector<8x128xf32>
    %22 = arith.divf %20, %21 : vector<8x128xf32>
    %23 = vector.extract_strided_slice %16 {offsets = [0, 128], sizes = [8, 128], strides = [1, 1]} : vector<8x512xf32> to vector<8x128xf32>
    %24 = arith.negf %23 : vector<8x128xf32>
    %25 = math.exp %24 : vector<8x128xf32>
    %cst_14 = arith.constant 1.000000e+00 : f32
    %26 = vector.broadcast %cst_14 : f32 to vector<8x128xf32>
    %27 = arith.addf %26, %25 : vector<8x128xf32>
    %28 = arith.divf %26, %27 : vector<8x128xf32>
    %29 = vector.extract_strided_slice %16 {offsets = [0, 256], sizes = [8, 128], strides = [1, 1]} : vector<8x512xf32> to vector<8x128xf32>
    %30 = math.tanh %29 : vector<8x128xf32>
    %31 = vector.extract_strided_slice %16 {offsets = [0, 384], sizes = [8, 128], strides = [1, 1]} : vector<8x512xf32> to vector<8x128xf32>
    %32 = arith.negf %31 : vector<8x128xf32>
    %33 = math.exp %32 : vector<8x128xf32>
    %cst_15 = arith.constant 1.000000e+00 : f32
    %34 = vector.broadcast %cst_15 : f32 to vector<8x128xf32>
    %35 = arith.addf %34, %33 : vector<8x128xf32>
    %36 = arith.divf %34, %35 : vector<8x128xf32>
    %37 = arith.mulf %28, %8 : vector<8x128xf32>
    %38 = arith.mulf %22, %30 : vector<8x128xf32>
    %39 = arith.addf %37, %38 : vector<8x128xf32>
    %40 = math.tanh %39 : vector<8x128xf32>
    %41 = arith.mulf %36, %40 : vector<8x128xf32>
    %c1_i32 = arith.constant 1 : i32
    %c8_i32_16 = arith.constant 8 : i32
    %42 = arith.muli %c1_i32, %c8_i32_16 : i32
    %43 = tpu.assume_multiple %42, 8 : i32
    %44 = arith.index_cast %43 : i32 to index
    %c0_17 = arith.constant 0 : index
    %45 = vector.load %arg7[%44, %c0_17] : memref<64x512xf32, #tpu.memory_space<vmem>>, vector<8x512xf32>
    %46 = arith.truncf %41 : vector<8x128xf32> to vector<8x128xbf16>
    %c0_18 = arith.constant 0 : index
    %c0_19 = arith.constant 0 : index
    %47 = vector.load %arg2[%c0_18, %c0_19] : memref<128x512xbf16, #tpu.memory_space<vmem>>, vector<128x512xbf16>
    %cst_20 = arith.constant dense<0.000000e+00> : vector<8x512xf32>
    %48 = tpu.matmul %46, %47, %cst_20 {dimension_numbers = #tpu.dot_dimension_numbers<[1], [0], [0], [1], [0, 0, 1, 1], [], []>} : vector<8x128xbf16>, vector<128x512xbf16>, vector<8x512xf32> -> vector<8x512xf32>
    %49 = arith.addf %45, %48 : vector<8x512xf32>
    %50 = vector.extract_strided_slice %49 {offsets = [0, 0], sizes = [8, 128], strides = [1, 1]} : vector<8x512xf32> to vector<8x128xf32>
    %51 = arith.negf %50 : vector<8x128xf32>
    %52 = math.exp %51 : vector<8x128xf32>
    %cst_21 = arith.constant 1.000000e+00 : f32
    %53 = vector.broadcast %cst_21 : f32 to vector<8x128xf32>
    %54 = arith.addf %53, %52 : vector<8x128xf32>
    %55 = arith.divf %53, %54 : vector<8x128xf32>
    %56 = vector.extract_strided_slice %49 {offsets = [0, 128], sizes = [8, 128], strides = [1, 1]} : vector<8x512xf32> to vector<8x128xf32>
    %57 = arith.negf %56 : vector<8x128xf32>
    %58 = math.exp %57 : vector<8x128xf32>
    %cst_22 = arith.constant 1.000000e+00 : f32
    %59 = vector.broadcast %cst_22 : f32 to vector<8x128xf32>
    %60 = arith.addf %59, %58 : vector<8x128xf32>
    %61 = arith.divf %59, %60 : vector<8x128xf32>
    %62 = vector.extract_strided_slice %49 {offsets = [0, 256], sizes = [8, 128], strides = [1, 1]} : vector<8x512xf32> to vector<8x128xf32>
    %63 = math.tanh %62 : vector<8x128xf32>
    %64 = vector.extract_strided_slice %49 {offsets = [0, 384], sizes = [8, 128], strides = [1, 1]} : vector<8x512xf32> to vector<8x128xf32>
    %65 = arith.negf %64 : vector<8x128xf32>
    %66 = math.exp %65 : vector<8x128xf32>
    %cst_23 = arith.constant 1.000000e+00 : f32
    %67 = vector.broadcast %cst_23 : f32 to vector<8x128xf32>
    %68 = arith.addf %67, %66 : vector<8x128xf32>
    %69 = arith.divf %67, %68 : vector<8x128xf32>
    %70 = arith.mulf %61, %39 : vector<8x128xf32>
    %71 = arith.mulf %55, %63 : vector<8x128xf32>
    %72 = arith.addf %70, %71 : vector<8x128xf32>
    %73 = math.tanh %72 : vector<8x128xf32>
    %74 = arith.mulf %69, %73 : vector<8x128xf32>
    %c2_i32 = arith.constant 2 : i32
    %c8_i32_24 = arith.constant 8 : i32
    %75 = arith.muli %c2_i32, %c8_i32_24 : i32
    %76 = tpu.assume_multiple %75, 8 : i32
    %77 = arith.index_cast %76 : i32 to index
    %c0_25 = arith.constant 0 : index
    %78 = vector.load %arg7[%77, %c0_25] : memref<64x512xf32, #tpu.memory_space<vmem>>, vector<8x512xf32>
    %79 = arith.truncf %74 : vector<8x128xf32> to vector<8x128xbf16>
    %c0_26 = arith.constant 0 : index
    %c0_27 = arith.constant 0 : index
    %80 = vector.load %arg2[%c0_26, %c0_27] : memref<128x512xbf16, #tpu.memory_space<vmem>>, vector<128x512xbf16>
    %cst_28 = arith.constant dense<0.000000e+00> : vector<8x512xf32>
    %81 = tpu.matmul %79, %80, %cst_28 {dimension_numbers = #tpu.dot_dimension_numbers<[1], [0], [0], [1], [0, 0, 1, 1], [], []>} : vector<8x128xbf16>, vector<128x512xbf16>, vector<8x512xf32> -> vector<8x512xf32>
    %82 = arith.addf %78, %81 : vector<8x512xf32>
    %83 = vector.extract_strided_slice %82 {offsets = [0, 0], sizes = [8, 128], strides = [1, 1]} : vector<8x512xf32> to vector<8x128xf32>
    %84 = arith.negf %83 : vector<8x128xf32>
    %85 = math.exp %84 : vector<8x128xf32>
    %cst_29 = arith.constant 1.000000e+00 : f32
    %86 = vector.broadcast %cst_29 : f32 to vector<8x128xf32>
    %87 = arith.addf %86, %85 : vector<8x128xf32>
    %88 = arith.divf %86, %87 : vector<8x128xf32>
    %89 = vector.extract_strided_slice %82 {offsets = [0, 128], sizes = [8, 128], strides = [1, 1]} : vector<8x512xf32> to vector<8x128xf32>
    %90 = arith.negf %89 : vector<8x128xf32>
    %91 = math.exp %90 : vector<8x128xf32>
    %cst_30 = arith.constant 1.000000e+00 : f32
    %92 = vector.broadcast %cst_30 : f32 to vector<8x128xf32>
    %93 = arith.addf %92, %91 : vector<8x128xf32>
    %94 = arith.divf %92, %93 : vector<8x128xf32>
    %95 = vector.extract_strided_slice %82 {offsets = [0, 256], sizes = [8, 128], strides = [1, 1]} : vector<8x512xf32> to vector<8x128xf32>
    %96 = math.tanh %95 : vector<8x128xf32>
    %97 = vector.extract_strided_slice %82 {offsets = [0, 384], sizes = [8, 128], strides = [1, 1]} : vector<8x512xf32> to vector<8x128xf32>
    %98 = arith.negf %97 : vector<8x128xf32>
    %99 = math.exp %98 : vector<8x128xf32>
    %cst_31 = arith.constant 1.000000e+00 : f32
    %100 = vector.broadcast %cst_31 : f32 to vector<8x128xf32>
    %101 = arith.addf %100, %99 : vector<8x128xf32>
    %102 = arith.divf %100, %101 : vector<8x128xf32>
    %103 = arith.mulf %94, %72 : vector<8x128xf32>
    %104 = arith.mulf %88, %96 : vector<8x128xf32>
    %105 = arith.addf %103, %104 : vector<8x128xf32>
    %106 = math.tanh %105 : vector<8x128xf32>
    %107 = arith.mulf %102, %106 : vector<8x128xf32>
    %c3_i32 = arith.constant 3 : i32
    %c8_i32_32 = arith.constant 8 : i32
    %108 = arith.muli %c3_i32, %c8_i32_32 : i32
    %109 = tpu.assume_multiple %108, 8 : i32
    %110 = arith.index_cast %109 : i32 to index
    %c0_33 = arith.constant 0 : index
    %111 = vector.load %arg7[%110, %c0_33] : memref<64x512xf32, #tpu.memory_space<vmem>>, vector<8x512xf32>
    %112 = arith.truncf %107 : vector<8x128xf32> to vector<8x128xbf16>
    %c0_34 = arith.constant 0 : index
    %c0_35 = arith.constant 0 : index
    %113 = vector.load %arg2[%c0_34, %c0_35] : memref<128x512xbf16, #tpu.memory_space<vmem>>, vector<128x512xbf16>
    %cst_36 = arith.constant dense<0.000000e+00> : vector<8x512xf32>
    %114 = tpu.matmul %112, %113, %cst_36 {dimension_numbers = #tpu.dot_dimension_numbers<[1], [0], [0], [1], [0, 0, 1, 1], [], []>} : vector<8x128xbf16>, vector<128x512xbf16>, vector<8x512xf32> -> vector<8x512xf32>
    %115 = arith.addf %111, %114 : vector<8x512xf32>
    %116 = vector.extract_strided_slice %115 {offsets = [0, 0], sizes = [8, 128], strides = [1, 1]} : vector<8x512xf32> to vector<8x128xf32>
    %117 = arith.negf %116 : vector<8x128xf32>
    %118 = math.exp %117 : vector<8x128xf32>
    %cst_37 = arith.constant 1.000000e+00 : f32
    %119 = vector.broadcast %cst_37 : f32 to vector<8x128xf32>
    %120 = arith.addf %119, %118 : vector<8x128xf32>
    %121 = arith.divf %119, %120 : vector<8x128xf32>
    %122 = vector.extract_strided_slice %115 {offsets = [0, 128], sizes = [8, 128], strides = [1, 1]} : vector<8x512xf32> to vector<8x128xf32>
    %123 = arith.negf %122 : vector<8x128xf32>
    %124 = math.exp %123 : vector<8x128xf32>
    %cst_38 = arith.constant 1.000000e+00 : f32
    %125 = vector.broadcast %cst_38 : f32 to vector<8x128xf32>
    %126 = arith.addf %125, %124 : vector<8x128xf32>
    %127 = arith.divf %125, %126 : vector<8x128xf32>
    %128 = vector.extract_strided_slice %115 {offsets = [0, 256], sizes = [8, 128], strides = [1, 1]} : vector<8x512xf32> to vector<8x128xf32>
    %129 = math.tanh %128 : vector<8x128xf32>
    %130 = vector.extract_strided_slice %115 {offsets = [0, 384], sizes = [8, 128], strides = [1, 1]} : vector<8x512xf32> to vector<8x128xf32>
    %131 = arith.negf %130 : vector<8x128xf32>
    %132 = math.exp %131 : vector<8x128xf32>
    %cst_39 = arith.constant 1.000000e+00 : f32
    %133 = vector.broadcast %cst_39 : f32 to vector<8x128xf32>
    %134 = arith.addf %133, %132 : vector<8x128xf32>
    %135 = arith.divf %133, %134 : vector<8x128xf32>
    %136 = arith.mulf %127, %105 : vector<8x128xf32>
    %137 = arith.mulf %121, %129 : vector<8x128xf32>
    %138 = arith.addf %136, %137 : vector<8x128xf32>
    %139 = math.tanh %138 : vector<8x128xf32>
    %140 = arith.mulf %135, %139 : vector<8x128xf32>
    %c4_i32 = arith.constant 4 : i32
    %c8_i32_40 = arith.constant 8 : i32
    %141 = arith.muli %c4_i32, %c8_i32_40 : i32
    %142 = tpu.assume_multiple %141, 8 : i32
    %143 = arith.index_cast %142 : i32 to index
    %c0_41 = arith.constant 0 : index
    %144 = vector.load %arg7[%143, %c0_41] : memref<64x512xf32, #tpu.memory_space<vmem>>, vector<8x512xf32>
    %145 = arith.truncf %140 : vector<8x128xf32> to vector<8x128xbf16>
    %c0_42 = arith.constant 0 : index
    %c0_43 = arith.constant 0 : index
    %146 = vector.load %arg2[%c0_42, %c0_43] : memref<128x512xbf16, #tpu.memory_space<vmem>>, vector<128x512xbf16>
    %cst_44 = arith.constant dense<0.000000e+00> : vector<8x512xf32>
    %147 = tpu.matmul %145, %146, %cst_44 {dimension_numbers = #tpu.dot_dimension_numbers<[1], [0], [0], [1], [0, 0, 1, 1], [], []>} : vector<8x128xbf16>, vector<128x512xbf16>, vector<8x512xf32> -> vector<8x512xf32>
    %148 = arith.addf %144, %147 : vector<8x512xf32>
    %149 = vector.extract_strided_slice %148 {offsets = [0, 0], sizes = [8, 128], strides = [1, 1]} : vector<8x512xf32> to vector<8x128xf32>
    %150 = arith.negf %149 : vector<8x128xf32>
    %151 = math.exp %150 : vector<8x128xf32>
    %cst_45 = arith.constant 1.000000e+00 : f32
    %152 = vector.broadcast %cst_45 : f32 to vector<8x128xf32>
    %153 = arith.addf %152, %151 : vector<8x128xf32>
    %154 = arith.divf %152, %153 : vector<8x128xf32>
    %155 = vector.extract_strided_slice %148 {offsets = [0, 128], sizes = [8, 128], strides = [1, 1]} : vector<8x512xf32> to vector<8x128xf32>
    %156 = arith.negf %155 : vector<8x128xf32>
    %157 = math.exp %156 : vector<8x128xf32>
    %cst_46 = arith.constant 1.000000e+00 : f32
    %158 = vector.broadcast %cst_46 : f32 to vector<8x128xf32>
    %159 = arith.addf %158, %157 : vector<8x128xf32>
    %160 = arith.divf %158, %159 : vector<8x128xf32>
    %161 = vector.extract_strided_slice %148 {offsets = [0, 256], sizes = [8, 128], strides = [1, 1]} : vector<8x512xf32> to vector<8x128xf32>
    %162 = math.tanh %161 : vector<8x128xf32>
    %163 = vector.extract_strided_slice %148 {offsets = [0, 384], sizes = [8, 128], strides = [1, 1]} : vector<8x512xf32> to vector<8x128xf32>
    %164 = arith.negf %163 : vector<8x128xf32>
    %165 = math.exp %164 : vector<8x128xf32>
    %cst_47 = arith.constant 1.000000e+00 : f32
    %166 = vector.broadcast %cst_47 : f32 to vector<8x128xf32>
    %167 = arith.addf %166, %165 : vector<8x128xf32>
    %168 = arith.divf %166, %167 : vector<8x128xf32>
    %169 = arith.mulf %160, %138 : vector<8x128xf32>
    %170 = arith.mulf %154, %162 : vector<8x128xf32>
    %171 = arith.addf %169, %170 : vector<8x128xf32>
    %172 = math.tanh %171 : vector<8x128xf32>
    %173 = arith.mulf %168, %172 : vector<8x128xf32>
    %c5_i32 = arith.constant 5 : i32
    %c8_i32_48 = arith.constant 8 : i32
    %174 = arith.muli %c5_i32, %c8_i32_48 : i32
    %175 = tpu.assume_multiple %174, 8 : i32
    %176 = arith.index_cast %175 : i32 to index
    %c0_49 = arith.constant 0 : index
    %177 = vector.load %arg7[%176, %c0_49] : memref<64x512xf32, #tpu.memory_space<vmem>>, vector<8x512xf32>
    %178 = arith.truncf %173 : vector<8x128xf32> to vector<8x128xbf16>
    %c0_50 = arith.constant 0 : index
    %c0_51 = arith.constant 0 : index
    %179 = vector.load %arg2[%c0_50, %c0_51] : memref<128x512xbf16, #tpu.memory_space<vmem>>, vector<128x512xbf16>
    %cst_52 = arith.constant dense<0.000000e+00> : vector<8x512xf32>
    %180 = tpu.matmul %178, %179, %cst_52 {dimension_numbers = #tpu.dot_dimension_numbers<[1], [0], [0], [1], [0, 0, 1, 1], [], []>} : vector<8x128xbf16>, vector<128x512xbf16>, vector<8x512xf32> -> vector<8x512xf32>
    %181 = arith.addf %177, %180 : vector<8x512xf32>
    %182 = vector.extract_strided_slice %181 {offsets = [0, 0], sizes = [8, 128], strides = [1, 1]} : vector<8x512xf32> to vector<8x128xf32>
    %183 = arith.negf %182 : vector<8x128xf32>
    %184 = math.exp %183 : vector<8x128xf32>
    %cst_53 = arith.constant 1.000000e+00 : f32
    %185 = vector.broadcast %cst_53 : f32 to vector<8x128xf32>
    %186 = arith.addf %185, %184 : vector<8x128xf32>
    %187 = arith.divf %185, %186 : vector<8x128xf32>
    %188 = vector.extract_strided_slice %181 {offsets = [0, 128], sizes = [8, 128], strides = [1, 1]} : vector<8x512xf32> to vector<8x128xf32>
    %189 = arith.negf %188 : vector<8x128xf32>
    %190 = math.exp %189 : vector<8x128xf32>
    %cst_54 = arith.constant 1.000000e+00 : f32
    %191 = vector.broadcast %cst_54 : f32 to vector<8x128xf32>
    %192 = arith.addf %191, %190 : vector<8x128xf32>
    %193 = arith.divf %191, %192 : vector<8x128xf32>
    %194 = vector.extract_strided_slice %181 {offsets = [0, 256], sizes = [8, 128], strides = [1, 1]} : vector<8x512xf32> to vector<8x128xf32>
    %195 = math.tanh %194 : vector<8x128xf32>
    %196 = vector.extract_strided_slice %181 {offsets = [0, 384], sizes = [8, 128], strides = [1, 1]} : vector<8x512xf32> to vector<8x128xf32>
    %197 = arith.negf %196 : vector<8x128xf32>
    %198 = math.exp %197 : vector<8x128xf32>
    %cst_55 = arith.constant 1.000000e+00 : f32
    %199 = vector.broadcast %cst_55 : f32 to vector<8x128xf32>
    %200 = arith.addf %199, %198 : vector<8x128xf32>
    %201 = arith.divf %199, %200 : vector<8x128xf32>
    %202 = arith.mulf %193, %171 : vector<8x128xf32>
    %203 = arith.mulf %187, %195 : vector<8x128xf32>
    %204 = arith.addf %202, %203 : vector<8x128xf32>
    %205 = math.tanh %204 : vector<8x128xf32>
    %206 = arith.mulf %201, %205 : vector<8x128xf32>
    %c6_i32 = arith.constant 6 : i32
    %c8_i32_56 = arith.constant 8 : i32
    %207 = arith.muli %c6_i32, %c8_i32_56 : i32
    %208 = tpu.assume_multiple %207, 8 : i32
    %209 = arith.index_cast %208 : i32 to index
    %c0_57 = arith.constant 0 : index
    %210 = vector.load %arg7[%209, %c0_57] : memref<64x512xf32, #tpu.memory_space<vmem>>, vector<8x512xf32>
    %211 = arith.truncf %206 : vector<8x128xf32> to vector<8x128xbf16>
    %c0_58 = arith.constant 0 : index
    %c0_59 = arith.constant 0 : index
    %212 = vector.load %arg2[%c0_58, %c0_59] : memref<128x512xbf16, #tpu.memory_space<vmem>>, vector<128x512xbf16>
    %cst_60 = arith.constant dense<0.000000e+00> : vector<8x512xf32>
    %213 = tpu.matmul %211, %212, %cst_60 {dimension_numbers = #tpu.dot_dimension_numbers<[1], [0], [0], [1], [0, 0, 1, 1], [], []>} : vector<8x128xbf16>, vector<128x512xbf16>, vector<8x512xf32> -> vector<8x512xf32>
    %214 = arith.addf %210, %213 : vector<8x512xf32>
    %215 = vector.extract_strided_slice %214 {offsets = [0, 0], sizes = [8, 128], strides = [1, 1]} : vector<8x512xf32> to vector<8x128xf32>
    %216 = arith.negf %215 : vector<8x128xf32>
    %217 = math.exp %216 : vector<8x128xf32>
    %cst_61 = arith.constant 1.000000e+00 : f32
    %218 = vector.broadcast %cst_61 : f32 to vector<8x128xf32>
    %219 = arith.addf %218, %217 : vector<8x128xf32>
    %220 = arith.divf %218, %219 : vector<8x128xf32>
    %221 = vector.extract_strided_slice %214 {offsets = [0, 128], sizes = [8, 128], strides = [1, 1]} : vector<8x512xf32> to vector<8x128xf32>
    %222 = arith.negf %221 : vector<8x128xf32>
    %223 = math.exp %222 : vector<8x128xf32>
    %cst_62 = arith.constant 1.000000e+00 : f32
    %224 = vector.broadcast %cst_62 : f32 to vector<8x128xf32>
    %225 = arith.addf %224, %223 : vector<8x128xf32>
    %226 = arith.divf %224, %225 : vector<8x128xf32>
    %227 = vector.extract_strided_slice %214 {offsets = [0, 256], sizes = [8, 128], strides = [1, 1]} : vector<8x512xf32> to vector<8x128xf32>
    %228 = math.tanh %227 : vector<8x128xf32>
    %229 = vector.extract_strided_slice %214 {offsets = [0, 384], sizes = [8, 128], strides = [1, 1]} : vector<8x512xf32> to vector<8x128xf32>
    %230 = arith.negf %229 : vector<8x128xf32>
    %231 = math.exp %230 : vector<8x128xf32>
    %cst_63 = arith.constant 1.000000e+00 : f32
    %232 = vector.broadcast %cst_63 : f32 to vector<8x128xf32>
    %233 = arith.addf %232, %231 : vector<8x128xf32>
    %234 = arith.divf %232, %233 : vector<8x128xf32>
    %235 = arith.mulf %226, %204 : vector<8x128xf32>
    %236 = arith.mulf %220, %228 : vector<8x128xf32>
    %237 = arith.addf %235, %236 : vector<8x128xf32>
    %238 = math.tanh %237 : vector<8x128xf32>
    %239 = arith.mulf %234, %238 : vector<8x128xf32>
    %c7_i32 = arith.constant 7 : i32
    %c8_i32_64 = arith.constant 8 : i32
    %240 = arith.muli %c7_i32, %c8_i32_64 : i32
    %241 = tpu.assume_multiple %240, 8 : i32
    %242 = arith.index_cast %241 : i32 to index
    %c0_65 = arith.constant 0 : index
    %243 = vector.load %arg7[%242, %c0_65] : memref<64x512xf32, #tpu.memory_space<vmem>>, vector<8x512xf32>
    %244 = arith.truncf %239 : vector<8x128xf32> to vector<8x128xbf16>
    %c0_66 = arith.constant 0 : index
    %c0_67 = arith.constant 0 : index
    %245 = vector.load %arg2[%c0_66, %c0_67] : memref<128x512xbf16, #tpu.memory_space<vmem>>, vector<128x512xbf16>
    %cst_68 = arith.constant dense<0.000000e+00> : vector<8x512xf32>
    %246 = tpu.matmul %244, %245, %cst_68 {dimension_numbers = #tpu.dot_dimension_numbers<[1], [0], [0], [1], [0, 0, 1, 1], [], []>} : vector<8x128xbf16>, vector<128x512xbf16>, vector<8x512xf32> -> vector<8x512xf32>
    %247 = arith.addf %243, %246 : vector<8x512xf32>
    %248 = vector.extract_strided_slice %247 {offsets = [0, 0], sizes = [8, 128], strides = [1, 1]} : vector<8x512xf32> to vector<8x128xf32>
    %249 = arith.negf %248 : vector<8x128xf32>
    %250 = math.exp %249 : vector<8x128xf32>
    %cst_69 = arith.constant 1.000000e+00 : f32
    %251 = vector.broadcast %cst_69 : f32 to vector<8x128xf32>
    %252 = arith.addf %251, %250 : vector<8x128xf32>
    %253 = arith.divf %251, %252 : vector<8x128xf32>
    %254 = vector.extract_strided_slice %247 {offsets = [0, 128], sizes = [8, 128], strides = [1, 1]} : vector<8x512xf32> to vector<8x128xf32>
    %255 = arith.negf %254 : vector<8x128xf32>
    %256 = math.exp %255 : vector<8x128xf32>
    %cst_70 = arith.constant 1.000000e+00 : f32
    %257 = vector.broadcast %cst_70 : f32 to vector<8x128xf32>
    %258 = arith.addf %257, %256 : vector<8x128xf32>
    %259 = arith.divf %257, %258 : vector<8x128xf32>
    %260 = vector.extract_strided_slice %247 {offsets = [0, 256], sizes = [8, 128], strides = [1, 1]} : vector<8x512xf32> to vector<8x128xf32>
    %261 = math.tanh %260 : vector<8x128xf32>
    %262 = vector.extract_strided_slice %247 {offsets = [0, 384], sizes = [8, 128], strides = [1, 1]} : vector<8x512xf32> to vector<8x128xf32>
    %263 = arith.negf %262 : vector<8x128xf32>
    %264 = math.exp %263 : vector<8x128xf32>
    %cst_71 = arith.constant 1.000000e+00 : f32
    %265 = vector.broadcast %cst_71 : f32 to vector<8x128xf32>
    %266 = arith.addf %265, %264 : vector<8x128xf32>
    %267 = arith.divf %265, %266 : vector<8x128xf32>
    %268 = arith.mulf %259, %237 : vector<8x128xf32>
    %269 = arith.mulf %253, %261 : vector<8x128xf32>
    %270 = arith.addf %268, %269 : vector<8x128xf32>
    %271 = math.tanh %270 : vector<8x128xf32>
    %272 = arith.mulf %267, %271 : vector<8x128xf32>
    %c8_i32_72 = arith.constant 8 : i32
    %273 = arith.truncf %272 : vector<8x128xf32> to vector<8x128xbf16>
    %c0_73 = arith.constant 0 : index
    %c0_74 = arith.constant 0 : index
    %274 = vector.load %arg4[%c0_73, %c0_74] : memref<128x128xbf16, #tpu.memory_space<vmem>>, vector<128x128xbf16>
    %cst_75 = arith.constant dense<0.000000e+00> : vector<8x128xf32>
    %275 = tpu.matmul %273, %274, %cst_75 {dimension_numbers = #tpu.dot_dimension_numbers<[1], [0], [0], [1], [0, 0, 1, 1], [], []>} : vector<8x128xbf16>, vector<128x128xbf16>, vector<8x128xf32> -> vector<8x128xf32>
    %c0_76 = arith.constant 0 : index
    %c0_77 = arith.constant 0 : index
    %276 = vector.load %arg5[%c0_76, %c0_77] : memref<1x128xf32, #tpu.memory_space<vmem>>, vector<1x128xf32>
    %277 = vector.broadcast %276 : vector<1x128xf32> to vector<8x128xf32>
    %278 = arith.addf %275, %277 : vector<8x128xf32>
    %c0_78 = arith.constant 0 : index
    %c0_79 = arith.constant 0 : index
    %279 = vector.load %arg6[%c0_78, %c0_79] : memref<8x128xf32, #tpu.memory_space<vmem>>, vector<8x128xf32>
    tpu.vector_store %arg6[%c0_78, %c0_79], %278 {strides = array<i32>} : memref<8x128xf32, #tpu.memory_space<vmem>>, vector<8x128xf32>,
    return
  }
}

</mosaic_0001>

<llo_original>
// kernel: tpu_custom_call.1
$region0: #{tpu_custom_call.1}
  #allocation0 [shape = 'u32[]', space=smem, size = 0x4, offset = 0x4, fixed_abs, tag = 'smem constant byte address 0x4 - core index']
  #allocation1 [shape = 'u32[72,128]{1,0:T(1,128)}', space=vmem, size = 0x9000, scoped, tag = 'internal scratch']
  #allocation2 [shape = 'f32[64,512]{1,0:T(8,128)}', space=vmem, size = 0x20000, scoped, tag = 'scratch operand']
  %s0 = inlined_call_operand.vmem [shape: bf16[64,16], index: 0, kind: input, shape index: {}]
  %s1 = inlined_call_operand.vmem [shape: bf16[16,512], index: 1, kind: input, shape index: {}]
  %s2 = inlined_call_operand.hbm [shape: bf16[128,512], index: 2, kind: input, shape index: {}]
  %s3 = inlined_call_operand.vmem [shape: f32[1,512], index: 3, kind: input, shape index: {}]
  %s4 = inlined_call_operand.hbm [shape: bf16[128,128], index: 4, kind: input, shape index: {}]
  %s5 = inlined_call_operand.vmem [shape: f32[1,128], index: 5, kind: input, shape index: {}]
  %s6 = inlined_call_operand.hbm [shape: f32[8,128], index: 6, kind: output, shape index: {}]
  %s7 = sld [smem:[#allocation0]]
  $region42: #{tpu_custom_call.1} parent=0
    _
  %s9 = ssub.s32 1, %s7
  %s10 = scalar_select 0, %s9, %s7
  $region1: #{tpu_custom_call.1} parent=0
    #allocation3 [shape = 'u8[131072]{0}', space=vmem, size = 0x20000, scoped, tag = 'input window, operand 2, single buffered']
    #allocation4 [shape = 's32[1]{0}', space=sflag, size = 0x4, scoped, tag = 'scoped memory for tpu_custom_call.1']
    #allocation5 [shape = 's32[1]{0}', space=sflag, size = 0x4, scoped, tag = 'scoped memory for tpu_custom_call.1']
    #allocation6 [shape = 'u8[32768]{0}', space=vmem, size = 0x8000, scoped, tag = 'input window, operand 4, single buffered']
    #allocation7 [shape = 's32[1]{0}', space=sflag, size = 0x4, scoped, tag = 'scoped memory for tpu_custom_call.1']
    #allocation8 [shape = 'u8[4096]{0}', space=vmem, size = 0x1000, scoped, tag = 'output window, operand 0, single buffered']
    %11 = vsyncpa [#allocation4], 0
    %12 = vsyncpa [#allocation7], 0
    %13 = vsyncpa [#allocation5], 0
    // Predicated region
    $region2: #{tpu_custom_call.1} parent=1 // pred_check
      _
    $region3: #{tpu_custom_call.1} parent=1 // pred_check_branch
      %15 = sbr.rel (0) target = $region5
    $region4: #{tpu_custom_call.1} parent=1 // pred_region
      _
    $region5: #{tpu_custom_call.1} parent=1 // pred_fallthru
      _
    // Predicated region
    $region6: #{tpu_custom_call.1} parent=1 // pred_check
      _
    $region7: #{tpu_custom_call.1} parent=1 // pred_check_branch
      %17 = sbr.rel (0) target = $region9
    $region8: #{tpu_custom_call.1} parent=1 // pred_region
      _
    $region9: #{tpu_custom_call.1} parent=1 // pred_fallthru
      _
    // Predicated region
    $region10: #{tpu_custom_call.1} parent=1 // pred_check
      _
    $region11: #{tpu_custom_call.1} parent=1 // pred_check_branch
      %19 = sbr.rel (0) target = $region13
    $region12: #{tpu_custom_call.1} parent=1 // pred_region
      %21 = vsyncadd [#allocation4], 0
      %s22 = sshll.u32 %s2, 4
      %s23 = int_to_ptr.hbm [resolvable:$true] %s22
      %s24 = sshll.u32 [#allocation3], 4
      %s25 = int_to_ptr.vmem [resolvable:$true] %s24
      %30 = dma.hbm_to_vmem [thread:$0]  %s23, 4096, %s25, [#allocation4], 256, 256, 16
    $region13: #{tpu_custom_call.1} parent=1 // pred_fallthru
      _
    // Predicated region
    $region14: #{tpu_custom_call.1} parent=1 // pred_check
      _
    $region15: #{tpu_custom_call.1} parent=1 // pred_check_branch
      %32 = sbr.rel (0) target = $region17
    $region16: #{tpu_custom_call.1} parent=1 // pred_region
      _
    $region17: #{tpu_custom_call.1} parent=1 // pred_fallthru
      _
    // Predicated region
    $region18: #{tpu_custom_call.1} parent=1 // pred_check
      _
    $region19: #{tpu_custom_call.1} parent=1 // pred_check_branch
      %34 = sbr.rel (0) target = $region21
    $region20: #{tpu_custom_call.1} parent=1 // pred_region
      %36 = vsyncadd [#allocation7], 0
      %s37 = sshll.u32 %s4, 4
      %s38 = int_to_ptr.hbm [resolvable:$true] %s37
      %s39 = sshll.u32 [#allocation6], 4
      %s40 = int_to_ptr.vmem [resolvable:$true] %s39
      %45 = dma.hbm_to_vmem [thread:$0]  %s38, 1024, %s40, [#allocation7], 64, 64, 4
    $region21: #{tpu_custom_call.1} parent=1 // pred_fallthru
      _
    // Predicated region
    $region22: #{tpu_custom_call.1} parent=1 // pred_check
      _
    $region23: #{tpu_custom_call.1} parent=1 // pred_check_branch
      %47 = sbr.rel (0) target = $region25
    $region24: #{tpu_custom_call.1} parent=1 // pred_region
      _
    $region25: #{tpu_custom_call.1} parent=1 // pred_fallthru
      _
    // Predicated region
    $region26: #{tpu_custom_call.1} parent=1 // pred_check
      _
    $region27: #{tpu_custom_call.1} parent=1 // pred_check_branch
      %49 = sbr.rel (0) target = $region29
    $region28: #{tpu_custom_call.1} parent=1 // pred_region
      %51 = dma.done [#allocation4], 4096
    $region29: #{tpu_custom_call.1} parent=1 // pred_fallthru
      _
    // Predicated region
    $region30: #{tpu_custom_call.1} parent=1 // pred_check
      _
    $region31: #{tpu_custom_call.1} parent=1 // pred_check_branch
      %53 = sbr.rel (0) target = $region33
    $region32: #{tpu_custom_call.1} parent=1 // pred_region
      %55 = dma.done [#allocation7], 1024
    $region33: #{tpu_custom_call.1} parent=1 // pred_fallthru
      _
    %v57 = vld [vmem:[%s0] sm:$0xf]
    %v58 = vld [vmem:[%s0 + $0x4] sm:$0xf]
    %v59 = vld [vmem:[%s0 + $0x8] sm:$0xf]
    %v60 = vld [vmem:[%s0 + $0xc] sm:$0xf]
    %v61 = vld [vmem:[%s0 + $0x10] sm:$0xf]
    %v62 = vld [vmem:[%s0 + $0x14] sm:$0xf]
    %v63 = vld [vmem:[%s0 + $0x18] sm:$0xf]
    %v64 = vld [vmem:[%s0 + $0x1c] sm:$0xf]
    %v65 = vld [vmem:[%s1] sm:$0xff]
    %v66 = vld [vmem:[%s1 + $0x8] sm:$0xff]
    %v67 = vld [vmem:[%s1 + $0x10] sm:$0xff]
    %v68 = vld [vmem:[%s1 + $0x18] sm:$0xff]
    %v69 = vld [vmem:[%s3] sm:$0xf]
    %v71 = vperm.slane %v69, 0
    %v72 = vperm.slane %v69, 1
    %v73 = vperm.slane %v69, 2
    %v74 = vperm.slane %v69, 3
    %v87 = vunpack.c.l.b16 %v57
    %v88 = vunpack.c.l.b16 %v58
    %v89 = vunpack.c.l.b16 %v59
    %v90 = vunpack.c.l.b16 %v60
    %v91 = vunpack.c.l.b16 %v61
    %v92 = vunpack.c.l.b16 %v62
    %v93 = vunpack.c.l.b16 %v63
    %v94 = vunpack.c.l.b16 %v64
    %v95 = vpack.c.b16 %v88, %v87
    %v96 = vpack.c.b16 %v90, %v89
    %v97 = vpack.c.b16 %v92, %v91
    %v98 = vpack.c.b16 %v94, %v93
    %v103 = vunpack.c.l.b16 %v65
    %v104 = vunpack.c.h.b16 %v65
    %v105 = vunpack.c.l.b16 %v66
    %v106 = vunpack.c.h.b16 %v66
    %v107 = vunpack.c.l.b16 %v67
    %v108 = vunpack.c.h.b16 %v67
    %v109 = vunpack.c.l.b16 %v68
    %v110 = vunpack.c.h.b16 %v68
    %v111 = vpack.c.b16 %v107, %v103
    %v112 = vpack.c.b16 %v108, %v104
    %v113 = vpack.c.b16 %v109, %v105
    %v114 = vpack.c.b16 %v110, %v106
    %vm119 = vcmask 130048
    %v121 = vsel %vm119, %v95, 0
    %v124 = vsel %vm119, %v96, 0
    %v127 = vsel %vm119, %v97, 0
    %v130 = vsel %vm119, %v98, 0
    %132 = vmatpush.bf16.msra.mxu0 0
    %133 = vmatpush.bf16.msra.mxu0 0
    %134 = vmatpush.bf16.msra.mxu0 0
    %135 = vmatpush.bf16.msra.mxu0 0
    %136 = vmatpush.bf16.msra.mxu0 0
    %137 = vmatpush.bf16.msra.mxu0 0
    %138 = vmatpush.bf16.msra.mxu0 0
    %139 = vmatpush.bf16.msra.mxu0 %v111
    %140 = vmatmul.bf16.gmra.mxu0 %v121
    %v141 = vpop.f32.mrf.mxu0
    %v142 = vadd.f32 %v71, %v141
    %v143 = vpop.f32.mrf.mxu0
    %v144 = vadd.f32 %v71, %v143
    %145 = vmatmul.bf16.gmra.mxu0 %v124
    %v146 = vpop.f32.mrf.mxu0
    %v147 = vadd.f32 %v71, %v146
    %v148 = vpop.f32.mrf.mxu0
    %v149 = vadd.f32 %v71, %v148
    %150 = vmatmul.bf16.gmra.mxu0 %v127
    %v151 = vpop.f32.mrf.mxu0
    %v152 = vadd.f32 %v71, %v151
    %v153 = vpop.f32.mrf.mxu0
    %v154 = vadd.f32 %v71, %v153
    %155 = vmatmul.bf16.gmra.mxu0 %v130
    %v156 = vpop.f32.mrf.mxu0
    %v157 = vadd.f32 %v71, %v156
    %v158 = vpop.f32.mrf.mxu0
    %v159 = vadd.f32 %v71, %v158
    %160 = vdwg.mxu0
    %161 = vmatpush.bf16.msra.mxu0 0
    %162 = vmatpush.bf16.msra.mxu0 0
    %163 = vmatpush.bf16.msra.mxu0 0
    %164 = vmatpush.bf16.msra.mxu0 0
    %165 = vmatpush.bf16.msra.mxu0 0
    %166 = vmatpush.bf16.msra.mxu0 0
    %167 = vmatpush.bf16.msra.mxu0 0
    %168 = vmatpush.bf16.msra.mxu0 %v112
    %169 = vmatmul.bf16.gmra.mxu0 %v121
    %v170 = vpop.f32.mrf.mxu0
    %v171 = vadd.f32 %v72, %v170
    %v172 = vpop.f32.mrf.mxu0
    %v173 = vadd.f32 %v72, %v172
    %174 = vmatmul.bf16.gmra.mxu0 %v124
    %v175 = vpop.f32.mrf.mxu0
    %v176 = vadd.f32 %v72, %v175
    %v177 = vpop.f32.mrf.mxu0
    %v178 = vadd.f32 %v72, %v177
    %179 = vmatmul.bf16.gmra.mxu0 %v127
    %v180 = vpop.f32.mrf.mxu0
    %v181 = vadd.f32 %v72, %v180
    %v182 = vpop.f32.mrf.mxu0
    %v183 = vadd.f32 %v72, %v182
    %184 = vmatmul.bf16.gmra.mxu0 %v130
    %v185 = vpop.f32.mrf.mxu0
    %v186 = vadd.f32 %v72, %v185
    %v187 = vpop.f32.mrf.mxu0
    %v188 = vadd.f32 %v72, %v187
    %189 = vdwg.mxu0
    %190 = vmatpush.bf16.msra.mxu0 0
    %191 = vmatpush.bf16.msra.mxu0 0
    %192 = vmatpush.bf16.msra.mxu0 0
    %193 = vmatpush.bf16.msra.mxu0 0
    %194 = vmatpush.bf16.msra.mxu0 0
    %195 = vmatpush.bf16.msra.mxu0 0
    %196 = vmatpush.bf16.msra.mxu0 0
    %197 = vmatpush.bf16.msra.mxu0 %v113
    %198 = vmatmul.bf16.gmra.mxu0 %v121
    %v199 = vpop.f32.mrf.mxu0
    %v200 = vadd.f32 %v73, %v199
    %v201 = vpop.f32.mrf.mxu0
    %v202 = vadd.f32 %v73, %v201
    %203 = vmatmul.bf16.gmra.mxu0 %v124
    %v204 = vpop.f32.mrf.mxu0
    %v205 = vadd.f32 %v73, %v204
    %v206 = vpop.f32.mrf.mxu0
    %v207 = vadd.f32 %v73, %v206
    %208 = vmatmul.bf16.gmra.mxu0 %v127
    %v209 = vpop.f32.mrf.mxu0
    %v210 = vadd.f32 %v73, %v209
    %v211 = vpop.f32.mrf.mxu0
    %v212 = vadd.f32 %v73, %v211
    %213 = vmatmul.bf16.gmra.mxu0 %v130
    %v214 = vpop.f32.mrf.mxu0
    %v215 = vadd.f32 %v73, %v214
    %v216 = vpop.f32.mrf.mxu0
    %v217 = vadd.f32 %v73, %v216
    %218 = vdwg.mxu0
    %219 = vmatpush.bf16.msra.mxu0 0
    %220 = vmatpush.bf16.msra.mxu0 0
    %221 = vmatpush.bf16.msra.mxu0 0
    %222 = vmatpush.bf16.msra.mxu0 0
    %223 = vmatpush.bf16.msra.mxu0 0
    %224 = vmatpush.bf16.msra.mxu0 0
    %225 = vmatpush.bf16.msra.mxu0 0
    %226 = vmatpush.bf16.msra.mxu0 %v114
    %227 = vmatmul.bf16.gmra.mxu0 %v121
    %v228 = vpop.f32.mrf.mxu0
    %v229 = vadd.f32 %v74, %v228
    %v230 = vpop.f32.mrf.mxu0
    %v231 = vadd.f32 %v74, %v230
    %232 = vmatmul.bf16.gmra.mxu0 %v124
    %v233 = vpop.f32.mrf.mxu0
    %v234 = vadd.f32 %v74, %v233
    %v235 = vpop.f32.mrf.mxu0
    %v236 = vadd.f32 %v74, %v235
    %237 = vmatmul.bf16.gmra.mxu0 %v127
    %v238 = vpop.f32.mrf.mxu0
    %v239 = vadd.f32 %v74, %v238
    %v240 = vpop.f32.mrf.mxu0
    %v241 = vadd.f32 %v74, %v240
    %242 = vmatmul.bf16.gmra.mxu0 %v130
    %v243 = vpop.f32.mrf.mxu0
    %v244 = vadd.f32 %v74, %v243
    %v245 = vpop.f32.mrf.mxu0
    %v246 = vadd.f32 %v74, %v245
    %247 = vdwg.mxu0
    %248 = vst [vmem:[#allocation2] sm:$0xff] %v142
    %249 = vst [vmem:[#allocation2 + $0x8] sm:$0xff] %v171
    %250 = vst [vmem:[#allocation2 + $0x10] sm:$0xff] %v200
    %251 = vst [vmem:[#allocation2 + $0x18] sm:$0xff] %v229
    %252 = vst [vmem:[#allocation2 + $0x20] sm:$0xff] %v144
    %253 = vst [vmem:[#allocation2 + $0x28] sm:$0xff] %v173
    %254 = vst [vmem:[#allocation2 + $0x30] sm:$0xff] %v202
    %255 = vst [vmem:[#allocation2 + $0x38] sm:$0xff] %v231
    %256 = vst [vmem:[#allocation2 + $0x40] sm:$0xff] %v147
    %257 = vst [vmem:[#allocation2 + $0x48] sm:$0xff] %v176
    %258 = vst [vmem:[#allocation2 + $0x50] sm:$0xff] %v205
    %259 = vst [vmem:[#allocation2 + $0x58] sm:$0xff] %v234
    %260 = vst [vmem:[#allocation2 + $0x60] sm:$0xff] %v149
    %261 = vst [vmem:[#allocation2 + $0x68] sm:$0xff] %v178
    %262 = vst [vmem:[#allocation2 + $0x70] sm:$0xff] %v207
    %263 = vst [vmem:[#allocation2 + $0x78] sm:$0xff] %v236
    %264 = vst [vmem:[#allocation2 + $0x80] sm:$0xff] %v152
    %265 = vst [vmem:[#allocation2 + $0x88] sm:$0xff] %v181
    %266 = vst [vmem:[#allocation2 + $0x90] sm:$0xff] %v210
    %267 = vst [vmem:[#allocation2 + $0x98] sm:$0xff] %v239
    %268 = vst [vmem:[#allocation2 + $0xa0] sm:$0xff] %v154
    %269 = vst [vmem:[#allocation2 + $0xa8] sm:$0xff] %v183
    %270 = vst [vmem:[#allocation2 + $0xb0] sm:$0xff] %v212
    %271 = vst [vmem:[#allocation2 + $0xb8] sm:$0xff] %v241
    %272 = vst [vmem:[#allocation2 + $0xc0] sm:$0xff] %v157
    %273 = vst [vmem:[#allocation2 + $0xc8] sm:$0xff] %v186
    %274 = vst [vmem:[#allocation2 + $0xd0] sm:$0xff] %v215
    %275 = vst [vmem:[#allocation2 + $0xd8] sm:$0xff] %v244
    %276 = vst [vmem:[#allocation2 + $0xe0] sm:$0xff] %v159
    %277 = vst [vmem:[#allocation2 + $0xe8] sm:$0xff] %v188
    %278 = vst [vmem:[#allocation2 + $0xf0] sm:$0xff] %v217
    %279 = vst [vmem:[#allocation2 + $0xf8] sm:$0xff] %v246
    %s280 = smul.u32 0, 4
    %s281 = smul.addr %s280, 8
    %s282 = scalar_lea.vmem [#allocation2], %s281
    %v283 = vld [vmem:[%s282] sm:$0xff]
    %v284 = vld [vmem:[%s282 + $0x8] sm:$0xff]
    %v285 = vld [vmem:[%s282 + $0x10] sm:$0xff]
    %v286 = vld [vmem:[%s282 + $0x18] sm:$0xff]
    %v287 = vld [vmem:[#allocation3] sm:$0xff]
    %v288 = vld [vmem:[#allocation3 + $0x8] sm:$0xff]
    %v289 = vld [vmem:[#allocation3 + $0x10] sm:$0xff]
    %v290 = vld [vmem:[#allocation3 + $0x18] sm:$0xff]
    %v291 = vld [vmem:[#allocation3 + $0x20] sm:$0xff]
    %v292 = vld [vmem:[#allocation3 + $0x28] sm:$0xff]
    %v293 = vld [vmem:[#allocation3 + $0x30] sm:$0xff]
    %v294 = vld [vmem:[#allocation3 + $0x38] sm:$0xff]
    %v295 = vld [vmem:[#allocation3 + $0x40] sm:$0xff]
    %v296 = vld [vmem:[#allocation3 + $0x48] sm:$0xff]
    %v297 = vld [vmem:[#allocation3 + $0x50] sm:$0xff]
    %v298 = vld [vmem:[#allocation3 + $0x58] sm:$0xff]
    %v299 = vld [vmem:[#allocation3 + $0x60] sm:$0xff]
    %v300 = vld [vmem:[#allocation3 + $0x68] sm:$0xff]
    %v301 = vld [vmem:[#allocation3 + $0x70] sm:$0xff]
    %v302 = vld [vmem:[#allocation3 + $0x78] sm:$0xff]
    %v303 = vld [vmem:[#allocation3 + $0x80] sm:$0xff]
    %v304 = vld [vmem:[#allocation3 + $0x88] sm:$0xff]
    %v305 = vld [vmem:[#allocation3 + $0x90] sm:$0xff]
    %v306 = vld [vmem:[#allocation3 + $0x98] sm:$0xff]
    %v307 = vld [vmem:[#allocation3 + $0xa0] sm:$0xff]
    %v308 = vld [vmem:[#allocation3 + $0xa8] sm:$0xff]
    %v309 = vld [vmem:[#allocation3 + $0xb0] sm:$0xff]
    %v310 = vld [vmem:[#allocation3 + $0xb8] sm:$0xff]
    %v311 = vld [vmem:[#allocation3 + $0xc0] sm:$0xff]
    %v312 = vld [vmem:[#allocation3 + $0xc8] sm:$0xff]
    %v313 = vld [vmem:[#allocation3 + $0xd0] sm:$0xff]
    %v314 = vld [vmem:[#allocation3 + $0xd8] sm:$0xff]
    %v315 = vld [vmem:[#allocation3 + $0xe0] sm:$0xff]
    %v316 = vld [vmem:[#allocation3 + $0xe8] sm:$0xff]
    %v317 = vld [vmem:[#allocation3 + $0xf0] sm:$0xff]
    %v318 = vld [vmem:[#allocation3 + $0xf8] sm:$0xff]
    %v351 = vunpack.c.l.b16 %v287
    %v352 = vunpack.c.h.b16 %v287
    %v353 = vunpack.c.l.b16 %v288
    %v354 = vunpack.c.h.b16 %v288
    %v355 = vunpack.c.l.b16 %v289
    %v356 = vunpack.c.h.b16 %v289
    %v357 = vunpack.c.l.b16 %v290
    %v358 = vunpack.c.h.b16 %v290
    %v359 = vunpack.c.l.b16 %v291
    %v360 = vunpack.c.h.b16 %v291
    %v361 = vunpack.c.l.b16 %v292
    %v362 = vunpack.c.h.b16 %v292
    %v363 = vunpack.c.l.b16 %v293
    %v364 = vunpack.c.h.b16 %v293
    %v365 = vunpack.c.l.b16 %v294
    %v366 = vunpack.c.h.b16 %v294
    %v367 = vunpack.c.l.b16 %v295
    %v368 = vunpack.c.h.b16 %v295
    %v369 = vunpack.c.l.b16 %v296
    %v370 = vunpack.c.h.b16 %v296
    %v371 = vunpack.c.l.b16 %v297
    %v372 = vunpack.c.h.b16 %v297
    %v373 = vunpack.c.l.b16 %v298
    %v374 = vunpack.c.h.b16 %v298
    %v375 = vunpack.c.l.b16 %v299
    %v376 = vunpack.c.h.b16 %v299
    %v377 = vunpack.c.l.b16 %v300
    %v378 = vunpack.c.h.b16 %v300
    %v379 = vunpack.c.l.b16 %v301
    %v380 = vunpack.c.h.b16 %v301
    %v381 = vunpack.c.l.b16 %v302
    %v382 = vunpack.c.h.b16 %v302
    %v383 = vunpack.c.l.b16 %v303
    %v384 = vunpack.c.h.b16 %v303
    %v385 = vunpack.c.l.b16 %v304
    %v386 = vunpack.c.h.b16 %v304
    %v387 = vunpack.c.l.b16 %v305
    %v388 = vunpack.c.h.b16 %v305
    %v389 = vunpack.c.l.b16 %v306
    %v390 = vunpack.c.h.b16 %v306
    %v391 = vunpack.c.l.b16 %v307
    %v392 = vunpack.c.h.b16 %v307
    %v393 = vunpack.c.l.b16 %v308
    %v394 = vunpack.c.h.b16 %v308
    %v395 = vunpack.c.l.b16 %v309
    %v396 = vunpack.c.h.b16 %v309
    %v397 = vunpack.c.l.b16 %v310
    %v398 = vunpack.c.h.b16 %v310
    %v399 = vunpack.c.l.b16 %v311
    %v400 = vunpack.c.h.b16 %v311
    %v401 = vunpack.c.l.b16 %v312
    %v402 = vunpack.c.h.b16 %v312
    %v403 = vunpack.c.l.b16 %v313
    %v404 = vunpack.c.h.b16 %v313
    %v405 = vunpack.c.l.b16 %v314
    %v406 = vunpack.c.h.b16 %v314
    %v407 = vunpack.c.l.b16 %v315
    %v408 = vunpack.c.h.b16 %v315
    %v409 = vunpack.c.l.b16 %v316
    %v410 = vunpack.c.h.b16 %v316
    %v411 = vunpack.c.l.b16 %v317
    %v412 = vunpack.c.h.b16 %v317
    %v413 = vunpack.c.l.b16 %v318
    %v414 = vunpack.c.h.b16 %v318
    %v415 = vpack.c.b16 %v355, %v351
    %v416 = vpack.c.b16 %v356, %v352
    %v417 = vpack.c.b16 %v357, %v353
    %v418 = vpack.c.b16 %v358, %v354
    %v419 = vpack.c.b16 %v363, %v359
    %v420 = vpack.c.b16 %v364, %v360
    %v421 = vpack.c.b16 %v365, %v361
    %v422 = vpack.c.b16 %v366, %v362
    %v423 = vpack.c.b16 %v371, %v367
    %v424 = vpack.c.b16 %v372, %v368
    %v425 = vpack.c.b16 %v373, %v369
    %v426 = vpack.c.b16 %v374, %v370
    %v427 = vpack.c.b16 %v379, %v375
    %v428 = vpack.c.b16 %v380, %v376
    %v429 = vpack.c.b16 %v381, %v377
    %v430 = vpack.c.b16 %v382, %v378
    %v431 = vpack.c.b16 %v387, %v383
    %v432 = vpack.c.b16 %v388, %v384
    %v433 = vpack.c.b16 %v389, %v385
    %v434 = vpack.c.b16 %v390, %v386
    %v435 = vpack.c.b16 %v395, %v391
    %v436 = vpack.c.b16 %v396, %v392
    %v437 = vpack.c.b16 %v397, %v393
    %v438 = vpack.c.b16 %v398, %v394
    %v439 = vpack.c.b16 %v403, %v399
    %v440 = vpack.c.b16 %v404, %v400
    %v441 = vpack.c.b16 %v405, %v401
    %v442 = vpack.c.b16 %v406, %v402
    %v443 = vpack.c.b16 %v411, %v407
    %v444 = vpack.c.b16 %v412, %v408
    %v445 = vpack.c.b16 %v413, %v409
    %v446 = vpack.c.b16 %v414, %v410
    %479 = vmatpush.bf16.msra.mxu0 %v443
    %480 = vmatpush.bf16.msra.mxu0 %v439
    %481 = vmatpush.bf16.msra.mxu0 %v435
    %482 = vmatpush.bf16.msra.mxu0 %v431
    %483 = vmatpush.bf16.msra.mxu0 %v427
    %484 = vmatpush.bf16.msra.mxu0 %v423
    %485 = vmatpush.bf16.msra.mxu0 %v419
    %486 = vmatpush.bf16.msra.mxu0 %v415
    %487 = vmatmul.bf16.gmra.mxu0 0
    %v488 = vpop.f32.mrf.mxu0
    %v489 = vadd.f32 0.0, %v488
    %v490 = vpop.f32.mrf.mxu0
    %491 = vdwg.mxu0
    %492 = vmatpush.bf16.msra.mxu0 %v444
    %493 = vmatpush.bf16.msra.mxu0 %v440
    %494 = vmatpush.bf16.msra.mxu0 %v436
    %495 = vmatpush.bf16.msra.mxu0 %v432
    %496 = vmatpush.bf16.msra.mxu0 %v428
    %497 = vmatpush.bf16.msra.mxu0 %v424
    %498 = vmatpush.bf16.msra.mxu0 %v420
    %499 = vmatpush.bf16.msra.mxu0 %v416
    %500 = vmatmul.bf16.gmra.mxu0 0
    %v501 = vpop.f32.mrf.mxu0
    %v502 = vadd.f32 0.0, %v501
    %v503 = vpop.f32.mrf.mxu0
    %504 = vdwg.mxu0
    %505 = vmatpush.bf16.msra.mxu0 %v445
    %506 = vmatpush.bf16.msra.mxu0 %v441
    %507 = vmatpush.bf16.msra.mxu0 %v437
    %508 = vmatpush.bf16.msra.mxu0 %v433
    %509 = vmatpush.bf16.msra.mxu0 %v429
    %510 = vmatpush.bf16.msra.mxu0 %v425
    %511 = vmatpush.bf16.msra.mxu0 %v421
    %512 = vmatpush.bf16.msra.mxu0 %v417
    %513 = vmatmul.bf16.gmra.mxu0 0
    %v514 = vpop.f32.mrf.mxu0
    %v515 = vadd.f32 0.0, %v514
    %v516 = vpop.f32.mrf.mxu0
    %517 = vdwg.mxu0
    %518 = vmatpush.bf16.msra.mxu0 %v446
    %519 = vmatpush.bf16.msra.mxu0 %v442
    %520 = vmatpush.bf16.msra.mxu0 %v438
    %521 = vmatpush.bf16.msra.mxu0 %v434
    %522 = vmatpush.bf16.msra.mxu0 %v430
    %523 = vmatpush.bf16.msra.mxu0 %v426
    %524 = vmatpush.bf16.msra.mxu0 %v422
    %525 = vmatpush.bf16.msra.mxu0 %v418
    %526 = vmatmul.bf16.gmra.mxu0 0
    %v527 = vpop.f32.mrf.mxu0
    %v528 = vadd.f32 0.0, %v527
    %v529 = vpop.f32.mrf.mxu0
    %530 = vdwg.mxu0
    %v531 = vadd.f32 %v283, %v489
    %v532 = vadd.f32 %v284, %v502
    %v533 = vadd.f32 %v285, %v515
    %v534 = vadd.f32 %v286, %v528
    %v535 = vxor.u32 %v531, 2147483648
    %v536 = vmul.f32 %v535, 1.442695
    %v537 = vpow.pop %v536
    %v538 = vadd.f32 %v537, 1.0
    %v539 = vrcp.pop %v538
    %v540 = vmul.f32 %v538, %v539
    %v541 = vsub.f32 1.0, %v540
    %v542 = vmul.f32 %v539, %v541
    %v543 = vadd.f32 %v539, %v542
    %vm544 = vweird.f32 %v538
    %vm545 = vweird.f32 %v539
    %vm546 = vmor %vm544, %vm545
    %v547 = vsel %vm546, %v539, %v543
    %v548 = vand.u32 2147483647, %v538
    %vm549 = vcmp.eq.f32.partialorder %v548, 8.507059e+37
    %v550 = vand.u32 %v538, 2147483648
    %v551 = vor.u32 1.1754944e-38, %v550
    %v552 = vsel %vm549, %v551, %v547
    %v553 = vmul.f32 1.0, %v552
    %v554 = vxor.u32 %v532, 2147483648
    %v555 = vmul.f32 %v554, 1.442695
    %v556 = vpow.pop %v555
    %v557 = vadd.f32 %v556, 1.0
    %v558 = vrcp.pop %v557
    %v559 = vmul.f32 %v557, %v558
    %v560 = vsub.f32 1.0, %v559
    %v561 = vmul.f32 %v558, %v560
    %v562 = vadd.f32 %v558, %v561
    %vm563 = vweird.f32 %v557
    %vm564 = vweird.f32 %v558
    %vm565 = vmor %vm563, %vm564
    %v566 = vsel %vm565, %v558, %v562
    %v567 = vand.u32 2147483647, %v557
    %vm568 = vcmp.eq.f32.partialorder %v567, 8.507059e+37
    %v569 = vand.u32 %v557, 2147483648
    %v570 = vor.u32 1.1754944e-38, %v569
    %v571 = vsel %vm568, %v570, %v566
    %v572 = vmul.f32 1.0, %v571
    %v573 = vtanh.pop %v533
    %v574 = vxor.u32 %v534, 2147483648
    %v575 = vmul.f32 %v574, 1.442695
    %v576 = vpow.pop %v575
    %v577 = vadd.f32 %v576, 1.0
    %v578 = vrcp.pop %v577
    %v579 = vmul.f32 %v577, %v578
    %v580 = vsub.f32 1.0, %v579
    %v581 = vmul.f32 %v578, %v580
    %v582 = vadd.f32 %v578, %v581
    %vm583 = vweird.f32 %v577
    %vm584 = vweird.f32 %v578
    %vm585 = vmor %vm583, %vm584
    %v586 = vsel %vm585, %v578, %v582
    %v587 = vand.u32 2147483647, %v577
    %vm588 = vcmp.eq.f32.partialorder %v587, 8.507059e+37
    %v589 = vand.u32 %v577, 2147483648
    %v590 = vor.u32 1.1754944e-38, %v589
    %v591 = vsel %vm588, %v590, %v586
    %v592 = vmul.f32 1.0, %v591
    %v593 = vmul.f32 %v572, 0.0
    %v594 = vmul.f32 %v553, %v573
    %v595 = vadd.f32 %v593, %v594
    %v596 = vtanh.pop %v595
    %v597 = vmul.f32 %v592, %v596
    %s598 = smul.u32 1, 4
    %s599 = smul.addr %s598, 8
    %s600 = scalar_lea.vmem [#allocation2], %s599
    %v601 = vld [vmem:[%s600] sm:$0xff]
    %v602 = vld [vmem:[%s600 + $0x8] sm:$0xff]
    %v603 = vld [vmem:[%s600 + $0x10] sm:$0xff]
    %v604 = vld [vmem:[%s600 + $0x18] sm:$0xff]
    %v605 = vpack.c.bf16 %v597, %v597
    %606 = vmatpush.bf16.msra.mxu0 %v443
    %607 = vmatpush.bf16.msra.mxu0 %v439
    %608 = vmatpush.bf16.msra.mxu0 %v435
    %609 = vmatpush.bf16.msra.mxu0 %v431
    %610 = vmatpush.bf16.msra.mxu0 %v427
    %611 = vmatpush.bf16.msra.mxu0 %v423
    %612 = vmatpush.bf16.msra.mxu0 %v419
    %613 = vmatpush.bf16.msra.mxu0 %v415
    %614 = vmatmul.bf16.gmra.mxu0 %v605
    %v615 = vpop.f32.mrf.mxu0
    %v616 = vadd.f32 0.0, %v615
    %v617 = vpop.f32.mrf.mxu0
    %618 = vdwg.mxu0
    %619 = vmatpush.bf16.msra.mxu0 %v444
    %620 = vmatpush.bf16.msra.mxu0 %v440
    %621 = vmatpush.bf16.msra.mxu0 %v436
    %622 = vmatpush.bf16.msra.mxu0 %v432
    %623 = vmatpush.bf16.msra.mxu0 %v428
    %624 = vmatpush.bf16.msra.mxu0 %v424
    %625 = vmatpush.bf16.msra.mxu0 %v420
    %626 = vmatpush.bf16.msra.mxu0 %v416
    %627 = vmatmul.bf16.gmra.mxu0 %v605
    %v628 = vpop.f32.mrf.mxu0
    %v629 = vadd.f32 0.0, %v628
    %v630 = vpop.f32.mrf.mxu0
    %631 = vdwg.mxu0
    %632 = vmatpush.bf16.msra.mxu0 %v445
    %633 = vmatpush.bf16.msra.mxu0 %v441
    %634 = vmatpush.bf16.msra.mxu0 %v437
    %635 = vmatpush.bf16.msra.mxu0 %v433
    %636 = vmatpush.bf16.msra.mxu0 %v429
    %637 = vmatpush.bf16.msra.mxu0 %v425
    %638 = vmatpush.bf16.msra.mxu0 %v421
    %639 = vmatpush.bf16.msra.mxu0 %v417
    %640 = vmatmul.bf16.gmra.mxu0 %v605
    %v641 = vpop.f32.mrf.mxu0
    %v642 = vadd.f32 0.0, %v641
    %v643 = vpop.f32.mrf.mxu0
    %644 = vdwg.mxu0
    %645 = vmatpush.bf16.msra.mxu0 %v446
    %646 = vmatpush.bf16.msra.mxu0 %v442
    %647 = vmatpush.bf16.msra.mxu0 %v438
    %648 = vmatpush.bf16.msra.mxu0 %v434
    %649 = vmatpush.bf16.msra.mxu0 %v430
    %650 = vmatpush.bf16.msra.mxu0 %v426
    %651 = vmatpush.bf16.msra.mxu0 %v422
    %652 = vmatpush.bf16.msra.mxu0 %v418
    %653 = vmatmul.bf16.gmra.mxu0 %v605
    %v654 = vpop.f32.mrf.mxu0
    %v655 = vadd.f32 0.0, %v654
    %v656 = vpop.f32.mrf.mxu0
    %657 = vdwg.mxu0
    %v658 = vadd.f32 %v601, %v616
    %v659 = vadd.f32 %v602, %v629
    %v660 = vadd.f32 %v603, %v642
    %v661 = vadd.f32 %v604, %v655
    %v662 = vxor.u32 %v658, 2147483648
    %v663 = vmul.f32 %v662, 1.442695
    %v664 = vpow.pop %v663
    %v665 = vadd.f32 %v664, 1.0
    %v666 = vrcp.pop %v665
    %v667 = vmul.f32 %v665, %v666
    %v668 = vsub.f32 1.0, %v667
    %v669 = vmul.f32 %v666, %v668
    %v670 = vadd.f32 %v666, %v669
    %vm671 = vweird.f32 %v665
    %vm672 = vweird.f32 %v666
    %vm673 = vmor %vm671, %vm672
    %v674 = vsel %vm673, %v666, %v670
    %v675 = vand.u32 2147483647, %v665
    %vm676 = vcmp.eq.f32.partialorder %v675, 8.507059e+37
    %v677 = vand.u32 %v665, 2147483648
    %v678 = vor.u32 1.1754944e-38, %v677
    %v679 = vsel %vm676, %v678, %v674
    %v680 = vmul.f32 1.0, %v679
    %v681 = vxor.u32 %v659, 2147483648
    %v682 = vmul.f32 %v681, 1.442695
    %v683 = vpow.pop %v682
    %v684 = vadd.f32 %v683, 1.0
    %v685 = vrcp.pop %v684
    %v686 = vmul.f32 %v684, %v685
    %v687 = vsub.f32 1.0, %v686
    %v688 = vmul.f32 %v685, %v687
    %v689 = vadd.f32 %v685, %v688
    %vm690 = vweird.f32 %v684
    %vm691 = vweird.f32 %v685
    %vm692 = vmor %vm690, %vm691
    %v693 = vsel %vm692, %v685, %v689
    %v694 = vand.u32 2147483647, %v684
    %vm695 = vcmp.eq.f32.partialorder %v694, 8.507059e+37
    %v696 = vand.u32 %v684, 2147483648
    %v697 = vor.u32 1.1754944e-38, %v696
    %v698 = vsel %vm695, %v697, %v693
    %v699 = vmul.f32 1.0, %v698
    %v700 = vtanh.pop %v660
    %v701 = vxor.u32 %v661, 2147483648
    %v702 = vmul.f32 %v701, 1.442695
    %v703 = vpow.pop %v702
    %v704 = vadd.f32 %v703, 1.0
    %v705 = vrcp.pop %v704
    %v706 = vmul.f32 %v704, %v705
    %v707 = vsub.f32 1.0, %v706
    %v708 = vmul.f32 %v705, %v707
    %v709 = vadd.f32 %v705, %v708
    %vm710 = vweird.f32 %v704
    %vm711 = vweird.f32 %v705
    %vm712 = vmor %vm710, %vm711
    %v713 = vsel %vm712, %v705, %v709
    %v714 = vand.u32 2147483647, %v704
    %vm715 = vcmp.eq.f32.partialorder %v714, 8.507059e+37
    %v716 = vand.u32 %v704, 2147483648
    %v717 = vor.u32 1.1754944e-38, %v716
    %v718 = vsel %vm715, %v717, %v713
    %v719 = vmul.f32 1.0, %v718
    %v720 = vmul.f32 %v699, %v595
    %v721 = vmul.f32 %v680, %v700
    %v722 = vadd.f32 %v720, %v721
    %v723 = vtanh.pop %v722
    %v724 = vmul.f32 %v719, %v723
    %s725 = smul.u32 2, 4
    %s726 = smul.addr %s725, 8
    %s727 = scalar_lea.vmem [#allocation2], %s726
    %v728 = vld [vmem:[%s727] sm:$0xff]
    %v729 = vld [vmem:[%s727 + $0x8] sm:$0xff]
    %v730 = vld [vmem:[%s727 + $0x10] sm:$0xff]
    %v731 = vld [vmem:[%s727 + $0x18] sm:$0xff]
    %v732 = vpack.c.bf16 %v724, %v724
    %733 = vmatpush.bf16.msra.mxu0 %v443
    %734 = vmatpush.bf16.msra.mxu0 %v439
    %735 = vmatpush.bf16.msra.mxu0 %v435
    %736 = vmatpush.bf16.msra.mxu0 %v431
    %737 = vmatpush.bf16.msra.mxu0 %v427
    %738 = vmatpush.bf16.msra.mxu0 %v423
    %739 = vmatpush.bf16.msra.mxu0 %v419
    %740 = vmatpush.bf16.msra.mxu0 %v415
    %741 = vmatmul.bf16.gmra.mxu0 %v732
    %v742 = vpop.f32.mrf.mxu0
    %v743 = vadd.f32 0.0, %v742
    %v744 = vpop.f32.mrf.mxu0
    %745 = vdwg.mxu0
    %746 = vmatpush.bf16.msra.mxu0 %v444
    %747 = vmatpush.bf16.msra.mxu0 %v440
    %748 = vmatpush.bf16.msra.mxu0 %v436
    %749 = vmatpush.bf16.msra.mxu0 %v432
    %750 = vmatpush.bf16.msra.mxu0 %v428
    %751 = vmatpush.bf16.msra.mxu0 %v424
    %752 = vmatpush.bf16.msra.mxu0 %v420
    %753 = vmatpush.bf16.msra.mxu0 %v416
    %754 = vmatmul.bf16.gmra.mxu0 %v732
    %v755 = vpop.f32.mrf.mxu0
    %v756 = vadd.f32 0.0, %v755
    %v757 = vpop.f32.mrf.mxu0
    %758 = vdwg.mxu0
    %759 = vmatpush.bf16.msra.mxu0 %v445
    %760 = vmatpush.bf16.msra.mxu0 %v441
    %761 = vmatpush.bf16.msra.mxu0 %v437
    %762 = vmatpush.bf16.msra.mxu0 %v433
    %763 = vmatpush.bf16.msra.mxu0 %v429
    %764 = vmatpush.bf16.msra.mxu0 %v425
    %765 = vmatpush.bf16.msra.mxu0 %v421
    %766 = vmatpush.bf16.msra.mxu0 %v417
    %767 = vmatmul.bf16.gmra.mxu0 %v732
    %v768 = vpop.f32.mrf.mxu0
    %v769 = vadd.f32 0.0, %v768
    %v770 = vpop.f32.mrf.mxu0
    %771 = vdwg.mxu0
    %772 = vmatpush.bf16.msra.mxu0 %v446
    %773 = vmatpush.bf16.msra.mxu0 %v442
    %774 = vmatpush.bf16.msra.mxu0 %v438
    %775 = vmatpush.bf16.msra.mxu0 %v434
    %776 = vmatpush.bf16.msra.mxu0 %v430
    %777 = vmatpush.bf16.msra.mxu0 %v426
    %778 = vmatpush.bf16.msra.mxu0 %v422
    %779 = vmatpush.bf16.msra.mxu0 %v418
    %780 = vmatmul.bf16.gmra.mxu0 %v732
    %v781 = vpop.f32.mrf.mxu0
    %v782 = vadd.f32 0.0, %v781
    %v783 = vpop.f32.mrf.mxu0
    %784 = vdwg.mxu0
    %v785 = vadd.f32 %v728, %v743
    %v786 = vadd.f32 %v729, %v756
    %v787 = vadd.f32 %v730, %v769
    %v788 = vadd.f32 %v731, %v782
    %v789 = vxor.u32 %v785, 2147483648
    %v790 = vmul.f32 %v789, 1.442695
    %v791 = vpow.pop %v790
    %v792 = vadd.f32 %v791, 1.0
    %v793 = vrcp.pop %v792
    %v794 = vmul.f32 %v792, %v793
    %v795 = vsub.f32 1.0, %v794
    %v796 = vmul.f32 %v793, %v795
    %v797 = vadd.f32 %v793, %v796
    %vm798 = vweird.f32 %v792
    %vm799 = vweird.f32 %v793
    %vm800 = vmor %vm798, %vm799
    %v801 = vsel %vm800, %v793, %v797
    %v802 = vand.u32 2147483647, %v792
    %vm803 = vcmp.eq.f32.partialorder %v802, 8.507059e+37
    %v804 = vand.u32 %v792, 2147483648
    %v805 = vor.u32 1.1754944e-38, %v804
    %v806 = vsel %vm803, %v805, %v801
    %v807 = vmul.f32 1.0, %v806
    %v808 = vxor.u32 %v786, 2147483648
    %v809 = vmul.f32 %v808, 1.442695
    %v810 = vpow.pop %v809
    %v811 = vadd.f32 %v810, 1.0
    %v812 = vrcp.pop %v811
    %v813 = vmul.f32 %v811, %v812
    %v814 = vsub.f32 1.0, %v813
    %v815 = vmul.f32 %v812, %v814
    %v816 = vadd.f32 %v812, %v815
    %vm817 = vweird.f32 %v811
    %vm818 = vweird.f32 %v812
    %vm819 = vmor %vm817, %vm818
    %v820 = vsel %vm819, %v812, %v816
    %v821 = vand.u32 2147483647, %v811
    %vm822 = vcmp.eq.f32.partialorder %v821, 8.507059e+37
    %v823 = vand.u32 %v811, 2147483648
    %v824 = vor.u32 1.1754944e-38, %v823
    %v825 = vsel %vm822, %v824, %v820
    %v826 = vmul.f32 1.0, %v825
    %v827 = vtanh.pop %v787
    %v828 = vxor.u32 %v788, 2147483648
    %v829 = vmul.f32 %v828, 1.442695
    %v830 = vpow.pop %v829
    %v831 = vadd.f32 %v830, 1.0
    %v832 = vrcp.pop %v831
    %v833 = vmul.f32 %v831, %v832
    %v834 = vsub.f32 1.0, %v833
    %v835 = vmul.f32 %v832, %v834
    %v836 = vadd.f32 %v832, %v835
    %vm837 = vweird.f32 %v831
    %vm838 = vweird.f32 %v832
    %vm839 = vmor %vm837, %vm838
    %v840 = vsel %vm839, %v832, %v836
    %v841 = vand.u32 2147483647, %v831
    %vm842 = vcmp.eq.f32.partialorder %v841, 8.507059e+37
    %v843 = vand.u32 %v831, 2147483648
    %v844 = vor.u32 1.1754944e-38, %v843
    %v845 = vsel %vm842, %v844, %v840
    %v846 = vmul.f32 1.0, %v845
    %v847 = vmul.f32 %v826, %v722
    %v848 = vmul.f32 %v807, %v827
    %v849 = vadd.f32 %v847, %v848
    %v850 = vtanh.pop %v849
    %v851 = vmul.f32 %v846, %v850
    %s852 = smul.u32 3, 4
    %s853 = smul.addr %s852, 8
    %s854 = scalar_lea.vmem [#allocation2], %s853
    %v855 = vld [vmem:[%s854] sm:$0xff]
    %v856 = vld [vmem:[%s854 + $0x8] sm:$0xff]
    %v857 = vld [vmem:[%s854 + $0x10] sm:$0xff]
    %v858 = vld [vmem:[%s854 + $0x18] sm:$0xff]
    %v859 = vpack.c.bf16 %v851, %v851
    %860 = vmatpush.bf16.msra.mxu0 %v443
    %861 = vmatpush.bf16.msra.mxu0 %v439
    %862 = vmatpush.bf16.msra.mxu0 %v435
    %863 = vmatpush.bf16.msra.mxu0 %v431
    %864 = vmatpush.bf16.msra.mxu0 %v427
    %865 = vmatpush.bf16.msra.mxu0 %v423
    %866 = vmatpush.bf16.msra.mxu0 %v419
    %867 = vmatpush.bf16.msra.mxu0 %v415
    %868 = vmatmul.bf16.gmra.mxu0 %v859
    %v869 = vpop.f32.mrf.mxu0
    %v870 = vadd.f32 0.0, %v869
    %v871 = vpop.f32.mrf.mxu0
    %872 = vdwg.mxu0
    %873 = vmatpush.bf16.msra.mxu0 %v444
    %874 = vmatpush.bf16.msra.mxu0 %v440
    %875 = vmatpush.bf16.msra.mxu0 %v436
    %876 = vmatpush.bf16.msra.mxu0 %v432
    %877 = vmatpush.bf16.msra.mxu0 %v428
    %878 = vmatpush.bf16.msra.mxu0 %v424
    %879 = vmatpush.bf16.msra.mxu0 %v420
    %880 = vmatpush.bf16.msra.mxu0 %v416
    %881 = vmatmul.bf16.gmra.mxu0 %v859
    %v882 = vpop.f32.mrf.mxu0
    %v883 = vadd.f32 0.0, %v882
    %v884 = vpop.f32.mrf.mxu0
    %885 = vdwg.mxu0
    %886 = vmatpush.bf16.msra.mxu0 %v445
    %887 = vmatpush.bf16.msra.mxu0 %v441
    %888 = vmatpush.bf16.msra.mxu0 %v437
    %889 = vmatpush.bf16.msra.mxu0 %v433
    %890 = vmatpush.bf16.msra.mxu0 %v429
    %891 = vmatpush.bf16.msra.mxu0 %v425
    %892 = vmatpush.bf16.msra.mxu0 %v421
    %893 = vmatpush.bf16.msra.mxu0 %v417
    %894 = vmatmul.bf16.gmra.mxu0 %v859
    %v895 = vpop.f32.mrf.mxu0
    %v896 = vadd.f32 0.0, %v895
    %v897 = vpop.f32.mrf.mxu0
    %898 = vdwg.mxu0
    %899 = vmatpush.bf16.msra.mxu0 %v446
    %900 = vmatpush.bf16.msra.mxu0 %v442
    %901 = vmatpush.bf16.msra.mxu0 %v438
    %902 = vmatpush.bf16.msra.mxu0 %v434
    %903 = vmatpush.bf16.msra.mxu0 %v430
    %904 = vmatpush.bf16.msra.mxu0 %v426
    %905 = vmatpush.bf16.msra.mxu0 %v422
    %906 = vmatpush.bf16.msra.mxu0 %v418
    %907 = vmatmul.bf16.gmra.mxu0 %v859
    %v908 = vpop.f32.mrf.mxu0
    %v909 = vadd.f32 0.0, %v908
    %v910 = vpop.f32.mrf.mxu0
    %911 = vdwg.mxu0
    %v912 = vadd.f32 %v855, %v870
    %v913 = vadd.f32 %v856, %v883
    %v914 = vadd.f32 %v857, %v896
    %v915 = vadd.f32 %v858, %v909
    %v916 = vxor.u32 %v912, 2147483648
    %v917 = vmul.f32 %v916, 1.442695
    %v918 = vpow.pop %v917
    %v919 = vadd.f32 %v918, 1.0
    %v920 = vrcp.pop %v919
    %v921 = vmul.f32 %v919, %v920
    %v922 = vsub.f32 1.0, %v921
    %v923 = vmul.f32 %v920, %v922
    %v924 = vadd.f32 %v920, %v923
    %vm925 = vweird.f32 %v919
    %vm926 = vweird.f32 %v920
    %vm927 = vmor %vm925, %vm926
    %v928 = vsel %vm927, %v920, %v924
    %v929 = vand.u32 2147483647, %v919
    %vm930 = vcmp.eq.f32.partialorder %v929, 8.507059e+37
    %v931 = vand.u32 %v919, 2147483648
    %v932 = vor.u32 1.1754944e-38, %v931
    %v933 = vsel %vm930, %v932, %v928
    %v934 = vmul.f32 1.0, %v933
    %v935 = vxor.u32 %v913, 2147483648
    %v936 = vmul.f32 %v935, 1.442695
    %v937 = vpow.pop %v936
    %v938 = vadd.f32 %v937, 1.0
    %v939 = vrcp.pop %v938
    %v940 = vmul.f32 %v938, %v939
    %v941 = vsub.f32 1.0, %v940
    %v942 = vmul.f32 %v939, %v941
    %v943 = vadd.f32 %v939, %v942
    %vm944 = vweird.f32 %v938
    %vm945 = vweird.f32 %v939
    %vm946 = vmor %vm944, %vm945
    %v947 = vsel %vm946, %v939, %v943
    %v948 = vand.u32 2147483647, %v938
    %vm949 = vcmp.eq.f32.partialorder %v948, 8.507059e+37
    %v950 = vand.u32 %v938, 2147483648
    %v951 = vor.u32 1.1754944e-38, %v950
    %v952 = vsel %vm949, %v951, %v947
    %v953 = vmul.f32 1.0, %v952
    %v954 = vtanh.pop %v914
    %v955 = vxor.u32 %v915, 2147483648
    %v956 = vmul.f32 %v955, 1.442695
    %v957 = vpow.pop %v956
    %v958 = vadd.f32 %v957, 1.0
    %v959 = vrcp.pop %v958
    %v960 = vmul.f32 %v958, %v959
    %v961 = vsub.f32 1.0, %v960
    %v962 = vmul.f32 %v959, %v961
    %v963 = vadd.f32 %v959, %v962
    %vm964 = vweird.f32 %v958
    %vm965 = vweird.f32 %v959
    %vm966 = vmor %vm964, %vm965
    %v967 = vsel %vm966, %v959, %v963
    %v968 = vand.u32 2147483647, %v958
    %vm969 = vcmp.eq.f32.partialorder %v968, 8.507059e+37
    %v970 = vand.u32 %v958, 2147483648
    %v971 = vor.u32 1.1754944e-38, %v970
    %v972 = vsel %vm969, %v971, %v967
    %v973 = vmul.f32 1.0, %v972
    %v974 = vmul.f32 %v953, %v849
    %v975 = vmul.f32 %v934, %v954
    %v976 = vadd.f32 %v974, %v975
    %v977 = vtanh.pop %v976
    %v978 = vmul.f32 %v973, %v977
    %s979 = smul.u32 4, 4
    %s980 = smul.addr %s979, 8
    %s981 = scalar_lea.vmem [#allocation2], %s980
    %v982 = vld [vmem:[%s981] sm:$0xff]
    %v983 = vld [vmem:[%s981 + $0x8] sm:$0xff]
    %v984 = vld [vmem:[%s981 + $0x10] sm:$0xff]
    %v985 = vld [vmem:[%s981 + $0x18] sm:$0xff]
    %v986 = vpack.c.bf16 %v978, %v978
    %987 = vmatpush.bf16.msra.mxu0 %v443
    %988 = vmatpush.bf16.msra.mxu0 %v439
    %989 = vmatpush.bf16.msra.mxu0 %v435
    %990 = vmatpush.bf16.msra.mxu0 %v431
    %991 = vmatpush.bf16.msra.mxu0 %v427
    %992 = vmatpush.bf16.msra.mxu0 %v423
    %993 = vmatpush.bf16.msra.mxu0 %v419
    %994 = vmatpush.bf16.msra.mxu0 %v415
    %995 = vmatmul.bf16.gmra.mxu0 %v986
    %v996 = vpop.f32.mrf.mxu0
    %v997 = vadd.f32 0.0, %v996
    %v998 = vpop.f32.mrf.mxu0
    %999 = vdwg.mxu0
    %1000 = vmatpush.bf16.msra.mxu0 %v444
    %1001 = vmatpush.bf16.msra.mxu0 %v440
    %1002 = vmatpush.bf16.msra.mxu0 %v436
    %1003 = vmatpush.bf16.msra.mxu0 %v432
    %1004 = vmatpush.bf16.msra.mxu0 %v428
    %1005 = vmatpush.bf16.msra.mxu0 %v424
    %1006 = vmatpush.bf16.msra.mxu0 %v420
    %1007 = vmatpush.bf16.msra.mxu0 %v416
    %1008 = vmatmul.bf16.gmra.mxu0 %v986
    %v1009 = vpop.f32.mrf.mxu0
    %v1010 = vadd.f32 0.0, %v1009
    %v1011 = vpop.f32.mrf.mxu0
    %1012 = vdwg.mxu0
    %1013 = vmatpush.bf16.msra.mxu0 %v445
    %1014 = vmatpush.bf16.msra.mxu0 %v441
    %1015 = vmatpush.bf16.msra.mxu0 %v437
    %1016 = vmatpush.bf16.msra.mxu0 %v433
    %1017 = vmatpush.bf16.msra.mxu0 %v429
    %1018 = vmatpush.bf16.msra.mxu0 %v425
    %1019 = vmatpush.bf16.msra.mxu0 %v421
    %1020 = vmatpush.bf16.msra.mxu0 %v417
    %1021 = vmatmul.bf16.gmra.mxu0 %v986
    %v1022 = vpop.f32.mrf.mxu0
    %v1023 = vadd.f32 0.0, %v1022
    %v1024 = vpop.f32.mrf.mxu0
    %1025 = vdwg.mxu0
    %1026 = vmatpush.bf16.msra.mxu0 %v446
    %1027 = vmatpush.bf16.msra.mxu0 %v442
    %1028 = vmatpush.bf16.msra.mxu0 %v438
    %1029 = vmatpush.bf16.msra.mxu0 %v434
    %1030 = vmatpush.bf16.msra.mxu0 %v430
    %1031 = vmatpush.bf16.msra.mxu0 %v426
    %1032 = vmatpush.bf16.msra.mxu0 %v422
    %1033 = vmatpush.bf16.msra.mxu0 %v418
    %1034 = vmatmul.bf16.gmra.mxu0 %v986
    %v1035 = vpop.f32.mrf.mxu0
    %v1036 = vadd.f32 0.0, %v1035
    %v1037 = vpop.f32.mrf.mxu0
    %1038 = vdwg.mxu0
    %v1039 = vadd.f32 %v982, %v997
    %v1040 = vadd.f32 %v983, %v1010
    %v1041 = vadd.f32 %v984, %v1023
    %v1042 = vadd.f32 %v985, %v1036
    %v1043 = vxor.u32 %v1039, 2147483648
    %v1044 = vmul.f32 %v1043, 1.442695
    %v1045 = vpow.pop %v1044
    %v1046 = vadd.f32 %v1045, 1.0
    %v1047 = vrcp.pop %v1046
    %v1048 = vmul.f32 %v1046, %v1047
    %v1049 = vsub.f32 1.0, %v1048
    %v1050 = vmul.f32 %v1047, %v1049
    %v1051 = vadd.f32 %v1047, %v1050
    %vm1052 = vweird.f32 %v1046
    %vm1053 = vweird.f32 %v1047
    %vm1054 = vmor %vm1052, %vm1053
    %v1055 = vsel %vm1054, %v1047, %v1051
    %v1056 = vand.u32 2147483647, %v1046
    %vm1057 = vcmp.eq.f32.partialorder %v1056, 8.507059e+37
    %v1058 = vand.u32 %v1046, 2147483648
    %v1059 = vor.u32 1.1754944e-38, %v1058
    %v1060 = vsel %vm1057, %v1059, %v1055
    %v1061 = vmul.f32 1.0, %v1060
    %v1062 = vxor.u32 %v1040, 2147483648
    %v1063 = vmul.f32 %v1062, 1.442695
    %v1064 = vpow.pop %v1063
    %v1065 = vadd.f32 %v1064, 1.0
    %v1066 = vrcp.pop %v1065
    %v1067 = vmul.f32 %v1065, %v1066
    %v1068 = vsub.f32 1.0, %v1067
    %v1069 = vmul.f32 %v1066, %v1068
    %v1070 = vadd.f32 %v1066, %v1069
    %vm1071 = vweird.f32 %v1065
    %vm1072 = vweird.f32 %v1066
    %vm1073 = vmor %vm1071, %vm1072
    %v1074 = vsel %vm1073, %v1066, %v1070
    %v1075 = vand.u32 2147483647, %v1065
    %vm1076 = vcmp.eq.f32.partialorder %v1075, 8.507059e+37
    %v1077 = vand.u32 %v1065, 2147483648
    %v1078 = vor.u32 1.1754944e-38, %v1077
    %v1079 = vsel %vm1076, %v1078, %v1074
    %v1080 = vmul.f32 1.0, %v1079
    %v1081 = vtanh.pop %v1041
    %v1082 = vxor.u32 %v1042, 2147483648
    %v1083 = vmul.f32 %v1082, 1.442695
    %v1084 = vpow.pop %v1083
    %v1085 = vadd.f32 %v1084, 1.0
    %v1086 = vrcp.pop %v1085
    %v1087 = vmul.f32 %v1085, %v1086
    %v1088 = vsub.f32 1.0, %v1087
    %v1089 = vmul.f32 %v1086, %v1088
    %v1090 = vadd.f32 %v1086, %v1089
    %vm1091 = vweird.f32 %v1085
    %vm1092 = vweird.f32 %v1086
    %vm1093 = vmor %vm1091, %vm1092
    %v1094 = vsel %vm1093, %v1086, %v1090
    %v1095 = vand.u32 2147483647, %v1085
    %vm1096 = vcmp.eq.f32.partialorder %v1095, 8.507059e+37
    %v1097 = vand.u32 %v1085, 2147483648
    %v1098 = vor.u32 1.1754944e-38, %v1097
    %v1099 = vsel %vm1096, %v1098, %v1094
    %v1100 = vmul.f32 1.0, %v1099
    %v1101 = vmul.f32 %v1080, %v976
    %v1102 = vmul.f32 %v1061, %v1081
    %v1103 = vadd.f32 %v1101, %v1102
    %v1104 = vtanh.pop %v1103
    %v1105 = vmul.f32 %v1100, %v1104
    %s1106 = smul.u32 5, 4
    %s1107 = smul.addr %s1106, 8
    %s1108 = scalar_lea.vmem [#allocation2], %s1107
    %v1109 = vld [vmem:[%s1108] sm:$0xff]
    %v1110 = vld [vmem:[%s1108 + $0x8] sm:$0xff]
    %v1111 = vld [vmem:[%s1108 + $0x10] sm:$0xff]
    %v1112 = vld [vmem:[%s1108 + $0x18] sm:$0xff]
    %v1113 = vpack.c.bf16 %v1105, %v1105
    %1114 = vmatpush.bf16.msra.mxu0 %v443
    %1115 = vmatpush.bf16.msra.mxu0 %v439
    %1116 = vmatpush.bf16.msra.mxu0 %v435
    %1117 = vmatpush.bf16.msra.mxu0 %v431
    %1118 = vmatpush.bf16.msra.mxu0 %v427
    %1119 = vmatpush.bf16.msra.mxu0 %v423
    %1120 = vmatpush.bf16.msra.mxu0 %v419
    %1121 = vmatpush.bf16.msra.mxu0 %v415
    %1122 = vmatmul.bf16.gmra.mxu0 %v1113
    %v1123 = vpop.f32.mrf.mxu0
    %v1124 = vadd.f32 0.0, %v1123
    %v1125 = vpop.f32.mrf.mxu0
    %1126 = vdwg.mxu0
    %1127 = vmatpush.bf16.msra.mxu0 %v444
    %1128 = vmatpush.bf16.msra.mxu0 %v440
    %1129 = vmatpush.bf16.msra.mxu0 %v436
    %1130 = vmatpush.bf16.msra.mxu0 %v432
    %1131 = vmatpush.bf16.msra.mxu0 %v428
    %1132 = vmatpush.bf16.msra.mxu0 %v424
    %1133 = vmatpush.bf16.msra.mxu0 %v420
    %1134 = vmatpush.bf16.msra.mxu0 %v416
    %1135 = vmatmul.bf16.gmra.mxu0 %v1113
    %v1136 = vpop.f32.mrf.mxu0
    %v1137 = vadd.f32 0.0, %v1136
    %v1138 = vpop.f32.mrf.mxu0
    %1139 = vdwg.mxu0
    %1140 = vmatpush.bf16.msra.mxu0 %v445
    %1141 = vmatpush.bf16.msra.mxu0 %v441
    %1142 = vmatpush.bf16.msra.mxu0 %v437
    %1143 = vmatpush.bf16.msra.mxu0 %v433
    %1144 = vmatpush.bf16.msra.mxu0 %v429
    %1145 = vmatpush.bf16.msra.mxu0 %v425
    %1146 = vmatpush.bf16.msra.mxu0 %v421
    %1147 = vmatpush.bf16.msra.mxu0 %v417
    %1148 = vmatmul.bf16.gmra.mxu0 %v1113
    %v1149 = vpop.f32.mrf.mxu0
    %v1150 = vadd.f32 0.0, %v1149
    %v1151 = vpop.f32.mrf.mxu0
    %1152 = vdwg.mxu0
    %1153 = vmatpush.bf16.msra.mxu0 %v446
    %1154 = vmatpush.bf16.msra.mxu0 %v442
    %1155 = vmatpush.bf16.msra.mxu0 %v438
    %1156 = vmatpush.bf16.msra.mxu0 %v434
    %1157 = vmatpush.bf16.msra.mxu0 %v430
    %1158 = vmatpush.bf16.msra.mxu0 %v426
    %1159 = vmatpush.bf16.msra.mxu0 %v422
    %1160 = vmatpush.bf16.msra.mxu0 %v418
    %1161 = vmatmul.bf16.gmra.mxu0 %v1113
    %v1162 = vpop.f32.mrf.mxu0
    %v1163 = vadd.f32 0.0, %v1162
    %v1164 = vpop.f32.mrf.mxu0
    %1165 = vdwg.mxu0
    %v1166 = vadd.f32 %v1109, %v1124
    %v1167 = vadd.f32 %v1110, %v1137
    %v1168 = vadd.f32 %v1111, %v1150
    %v1169 = vadd.f32 %v1112, %v1163
    %v1170 = vxor.u32 %v1166, 2147483648
    %v1171 = vmul.f32 %v1170, 1.442695
    %v1172 = vpow.pop %v1171
    %v1173 = vadd.f32 %v1172, 1.0
    %v1174 = vrcp.pop %v1173
    %v1175 = vmul.f32 %v1173, %v1174
    %v1176 = vsub.f32 1.0, %v1175
    %v1177 = vmul.f32 %v1174, %v1176
    %v1178 = vadd.f32 %v1174, %v1177
    %vm1179 = vweird.f32 %v1173
    %vm1180 = vweird.f32 %v1174
    %vm1181 = vmor %vm1179, %vm1180
    %v1182 = vsel %vm1181, %v1174, %v1178
    %v1183 = vand.u32 2147483647, %v1173
    %vm1184 = vcmp.eq.f32.partialorder %v1183, 8.507059e+37
    %v1185 = vand.u32 %v1173, 2147483648
    %v1186 = vor.u32 1.1754944e-38, %v1185
    %v1187 = vsel %vm1184, %v1186, %v1182
    %v1188 = vmul.f32 1.0, %v1187
    %v1189 = vxor.u32 %v1167, 2147483648
    %v1190 = vmul.f32 %v1189, 1.442695
    %v1191 = vpow.pop %v1190
    %v1192 = vadd.f32 %v1191, 1.0
    %v1193 = vrcp.pop %v1192
    %v1194 = vmul.f32 %v1192, %v1193
    %v1195 = vsub.f32 1.0, %v1194
    %v1196 = vmul.f32 %v1193, %v1195
    %v1197 = vadd.f32 %v1193, %v1196
    %vm1198 = vweird.f32 %v1192
    %vm1199 = vweird.f32 %v1193
    %vm1200 = vmor %vm1198, %vm1199
    %v1201 = vsel %vm1200, %v1193, %v1197
    %v1202 = vand.u32 2147483647, %v1192
    %vm1203 = vcmp.eq.f32.partialorder %v1202, 8.507059e+37
    %v1204 = vand.u32 %v1192, 2147483648
    %v1205 = vor.u32 1.1754944e-38, %v1204
    %v1206 = vsel %vm1203, %v1205, %v1201
    %v1207 = vmul.f32 1.0, %v1206
    %v1208 = vtanh.pop %v1168
    %v1209 = vxor.u32 %v1169, 2147483648
    %v1210 = vmul.f32 %v1209, 1.442695
    %v1211 = vpow.pop %v1210
    %v1212 = vadd.f32 %v1211, 1.0
    %v1213 = vrcp.pop %v1212
    %v1214 = vmul.f32 %v1212, %v1213
    %v1215 = vsub.f32 1.0, %v1214
    %v1216 = vmul.f32 %v1213, %v1215
    %v1217 = vadd.f32 %v1213, %v1216
    %vm1218 = vweird.f32 %v1212
    %vm1219 = vweird.f32 %v1213
    %vm1220 = vmor %vm1218, %vm1219
    %v1221 = vsel %vm1220, %v1213, %v1217
    %v1222 = vand.u32 2147483647, %v1212
    %vm1223 = vcmp.eq.f32.partialorder %v1222, 8.507059e+37
    %v1224 = vand.u32 %v1212, 2147483648
    %v1225 = vor.u32 1.1754944e-38, %v1224
    %v1226 = vsel %vm1223, %v1225, %v1221
    %v1227 = vmul.f32 1.0, %v1226
    %v1228 = vmul.f32 %v1207, %v1103
    %v1229 = vmul.f32 %v1188, %v1208
    %v1230 = vadd.f32 %v1228, %v1229
    %v1231 = vtanh.pop %v1230
    %v1232 = vmul.f32 %v1227, %v1231
    %s1233 = smul.u32 6, 4
    %s1234 = smul.addr %s1233, 8
    %s1235 = scalar_lea.vmem [#allocation2], %s1234
    %v1236 = vld [vmem:[%s1235] sm:$0xff]
    %v1237 = vld [vmem:[%s1235 + $0x8] sm:$0xff]
    %v1238 = vld [vmem:[%s1235 + $0x10] sm:$0xff]
    %v1239 = vld [vmem:[%s1235 + $0x18] sm:$0xff]
    %v1240 = vpack.c.bf16 %v1232, %v1232
    %1241 = vmatpush.bf16.msra.mxu0 %v443
    %1242 = vmatpush.bf16.msra.mxu0 %v439
    %1243 = vmatpush.bf16.msra.mxu0 %v435
    %1244 = vmatpush.bf16.msra.mxu0 %v431
    %1245 = vmatpush.bf16.msra.mxu0 %v427
    %1246 = vmatpush.bf16.msra.mxu0 %v423
    %1247 = vmatpush.bf16.msra.mxu0 %v419
    %1248 = vmatpush.bf16.msra.mxu0 %v415
    %1249 = vmatmul.bf16.gmra.mxu0 %v1240
    %v1250 = vpop.f32.mrf.mxu0
    %v1251 = vadd.f32 0.0, %v1250
    %v1252 = vpop.f32.mrf.mxu0
    %1253 = vdwg.mxu0
    %1254 = vmatpush.bf16.msra.mxu0 %v444
    %1255 = vmatpush.bf16.msra.mxu0 %v440
    %1256 = vmatpush.bf16.msra.mxu0 %v436
    %1257 = vmatpush.bf16.msra.mxu0 %v432
    %1258 = vmatpush.bf16.msra.mxu0 %v428
    %1259 = vmatpush.bf16.msra.mxu0 %v424
    %1260 = vmatpush.bf16.msra.mxu0 %v420
    %1261 = vmatpush.bf16.msra.mxu0 %v416
    %1262 = vmatmul.bf16.gmra.mxu0 %v1240
    %v1263 = vpop.f32.mrf.mxu0
    %v1264 = vadd.f32 0.0, %v1263
    %v1265 = vpop.f32.mrf.mxu0
    %1266 = vdwg.mxu0
    %1267 = vmatpush.bf16.msra.mxu0 %v445
    %1268 = vmatpush.bf16.msra.mxu0 %v441
    %1269 = vmatpush.bf16.msra.mxu0 %v437
    %1270 = vmatpush.bf16.msra.mxu0 %v433
    %1271 = vmatpush.bf16.msra.mxu0 %v429
    %1272 = vmatpush.bf16.msra.mxu0 %v425
    %1273 = vmatpush.bf16.msra.mxu0 %v421
    %1274 = vmatpush.bf16.msra.mxu0 %v417
    %1275 = vmatmul.bf16.gmra.mxu0 %v1240
    %v1276 = vpop.f32.mrf.mxu0
    %v1277 = vadd.f32 0.0, %v1276
    %v1278 = vpop.f32.mrf.mxu0
    %1279 = vdwg.mxu0
    %1280 = vmatpush.bf16.msra.mxu0 %v446
    %1281 = vmatpush.bf16.msra.mxu0 %v442
    %1282 = vmatpush.bf16.msra.mxu0 %v438
    %1283 = vmatpush.bf16.msra.mxu0 %v434
    %1284 = vmatpush.bf16.msra.mxu0 %v430
    %1285 = vmatpush.bf16.msra.mxu0 %v426
    %1286 = vmatpush.bf16.msra.mxu0 %v422
    %1287 = vmatpush.bf16.msra.mxu0 %v418
    %1288 = vmatmul.bf16.gmra.mxu0 %v1240
    %v1289 = vpop.f32.mrf.mxu0
    %v1290 = vadd.f32 0.0, %v1289
    %v1291 = vpop.f32.mrf.mxu0
    %1292 = vdwg.mxu0
    %v1293 = vadd.f32 %v1236, %v1251
    %v1294 = vadd.f32 %v1237, %v1264
    %v1295 = vadd.f32 %v1238, %v1277
    %v1296 = vadd.f32 %v1239, %v1290
    %v1297 = vxor.u32 %v1293, 2147483648
    %v1298 = vmul.f32 %v1297, 1.442695
    %v1299 = vpow.pop %v1298
    %v1300 = vadd.f32 %v1299, 1.0
    %v1301 = vrcp.pop %v1300
    %v1302 = vmul.f32 %v1300, %v1301
    %v1303 = vsub.f32 1.0, %v1302
    %v1304 = vmul.f32 %v1301, %v1303
    %v1305 = vadd.f32 %v1301, %v1304
    %vm1306 = vweird.f32 %v1300
    %vm1307 = vweird.f32 %v1301
    %vm1308 = vmor %vm1306, %vm1307
    %v1309 = vsel %vm1308, %v1301, %v1305
    %v1310 = vand.u32 2147483647, %v1300
    %vm1311 = vcmp.eq.f32.partialorder %v1310, 8.507059e+37
    %v1312 = vand.u32 %v1300, 2147483648
    %v1313 = vor.u32 1.1754944e-38, %v1312
    %v1314 = vsel %vm1311, %v1313, %v1309
    %v1315 = vmul.f32 1.0, %v1314
    %v1316 = vxor.u32 %v1294, 2147483648
    %v1317 = vmul.f32 %v1316, 1.442695
    %v1318 = vpow.pop %v1317
    %v1319 = vadd.f32 %v1318, 1.0
    %v1320 = vrcp.pop %v1319
    %v1321 = vmul.f32 %v1319, %v1320
    %v1322 = vsub.f32 1.0, %v1321
    %v1323 = vmul.f32 %v1320, %v1322
    %v1324 = vadd.f32 %v1320, %v1323
    %vm1325 = vweird.f32 %v1319
    %vm1326 = vweird.f32 %v1320
    %vm1327 = vmor %vm1325, %vm1326
    %v1328 = vsel %vm1327, %v1320, %v1324
    %v1329 = vand.u32 2147483647, %v1319
    %vm1330 = vcmp.eq.f32.partialorder %v1329, 8.507059e+37
    %v1331 = vand.u32 %v1319, 2147483648
    %v1332 = vor.u32 1.1754944e-38, %v1331
    %v1333 = vsel %vm1330, %v1332, %v1328
    %v1334 = vmul.f32 1.0, %v1333
    %v1335 = vtanh.pop %v1295
    %v1336 = vxor.u32 %v1296, 2147483648
    %v1337 = vmul.f32 %v1336, 1.442695
    %v1338 = vpow.pop %v1337
    %v1339 = vadd.f32 %v1338, 1.0
    %v1340 = vrcp.pop %v1339
    %v1341 = vmul.f32 %v1339, %v1340
    %v1342 = vsub.f32 1.0, %v1341
    %v1343 = vmul.f32 %v1340, %v1342
    %v1344 = vadd.f32 %v1340, %v1343
    %vm1345 = vweird.f32 %v1339
    %vm1346 = vweird.f32 %v1340
    %vm1347 = vmor %vm1345, %vm1346
    %v1348 = vsel %vm1347, %v1340, %v1344
    %v1349 = vand.u32 2147483647, %v1339
    %vm1350 = vcmp.eq.f32.partialorder %v1349, 8.507059e+37
    %v1351 = vand.u32 %v1339, 2147483648
    %v1352 = vor.u32 1.1754944e-38, %v1351
    %v1353 = vsel %vm1350, %v1352, %v1348
    %v1354 = vmul.f32 1.0, %v1353
    %v1355 = vmul.f32 %v1334, %v1230
    %v1356 = vmul.f32 %v1315, %v1335
    %v1357 = vadd.f32 %v1355, %v1356
    %v1358 = vtanh.pop %v1357
    %v1359 = vmul.f32 %v1354, %v1358
    %s1360 = smul.u32 7, 4
    %s1361 = smul.addr %s1360, 8
    %s1362 = scalar_lea.vmem [#allocation2], %s1361
    %v1363 = vld [vmem:[%s1362] sm:$0xff]
    %v1364 = vld [vmem:[%s1362 + $0x8] sm:$0xff]
    %v1365 = vld [vmem:[%s1362 + $0x10] sm:$0xff]
    %v1366 = vld [vmem:[%s1362 + $0x18] sm:$0xff]
    %v1367 = vpack.c.bf16 %v1359, %v1359
    %1368 = vmatpush.bf16.msra.mxu0 %v443
    %1369 = vmatpush.bf16.msra.mxu0 %v439
    %1370 = vmatpush.bf16.msra.mxu0 %v435
    %1371 = vmatpush.bf16.msra.mxu0 %v431
    %1372 = vmatpush.bf16.msra.mxu0 %v427
    %1373 = vmatpush.bf16.msra.mxu0 %v423
    %1374 = vmatpush.bf16.msra.mxu0 %v419
    %1375 = vmatpush.bf16.msra.mxu0 %v415
    %1376 = vmatmul.bf16.gmra.mxu0 %v1367
    %v1377 = vpop.f32.mrf.mxu0
    %v1378 = vadd.f32 0.0, %v1377
    %v1379 = vpop.f32.mrf.mxu0
    %1380 = vdwg.mxu0
    %1381 = vmatpush.bf16.msra.mxu0 %v444
    %1382 = vmatpush.bf16.msra.mxu0 %v440
    %1383 = vmatpush.bf16.msra.mxu0 %v436
    %1384 = vmatpush.bf16.msra.mxu0 %v432
    %1385 = vmatpush.bf16.msra.mxu0 %v428
    %1386 = vmatpush.bf16.msra.mxu0 %v424
    %1387 = vmatpush.bf16.msra.mxu0 %v420
    %1388 = vmatpush.bf16.msra.mxu0 %v416
    %1389 = vmatmul.bf16.gmra.mxu0 %v1367
    %v1390 = vpop.f32.mrf.mxu0
    %v1391 = vadd.f32 0.0, %v1390
    %v1392 = vpop.f32.mrf.mxu0
    %1393 = vdwg.mxu0
    %1394 = vmatpush.bf16.msra.mxu0 %v445
    %1395 = vmatpush.bf16.msra.mxu0 %v441
    %1396 = vmatpush.bf16.msra.mxu0 %v437
    %1397 = vmatpush.bf16.msra.mxu0 %v433
    %1398 = vmatpush.bf16.msra.mxu0 %v429
    %1399 = vmatpush.bf16.msra.mxu0 %v425
    %1400 = vmatpush.bf16.msra.mxu0 %v421
    %1401 = vmatpush.bf16.msra.mxu0 %v417
    %1402 = vmatmul.bf16.gmra.mxu0 %v1367
    %v1403 = vpop.f32.mrf.mxu0
    %v1404 = vadd.f32 0.0, %v1403
    %v1405 = vpop.f32.mrf.mxu0
    %1406 = vdwg.mxu0
    %1407 = vmatpush.bf16.msra.mxu0 %v446
    %1408 = vmatpush.bf16.msra.mxu0 %v442
    %1409 = vmatpush.bf16.msra.mxu0 %v438
    %1410 = vmatpush.bf16.msra.mxu0 %v434
    %1411 = vmatpush.bf16.msra.mxu0 %v430
    %1412 = vmatpush.bf16.msra.mxu0 %v426
    %1413 = vmatpush.bf16.msra.mxu0 %v422
    %1414 = vmatpush.bf16.msra.mxu0 %v418
    %1415 = vmatmul.bf16.gmra.mxu0 %v1367
    %v1416 = vpop.f32.mrf.mxu0
    %v1417 = vadd.f32 0.0, %v1416
    %v1418 = vpop.f32.mrf.mxu0
    %1419 = vdwg.mxu0
    %v1420 = vadd.f32 %v1363, %v1378
    %v1421 = vadd.f32 %v1364, %v1391
    %v1422 = vadd.f32 %v1365, %v1404
    %v1423 = vadd.f32 %v1366, %v1417
    %v1424 = vxor.u32 %v1420, 2147483648
    %v1425 = vmul.f32 %v1424, 1.442695
    %v1426 = vpow.pop %v1425
    %v1427 = vadd.f32 %v1426, 1.0
    %v1428 = vrcp.pop %v1427
    %v1429 = vmul.f32 %v1427, %v1428
    %v1430 = vsub.f32 1.0, %v1429
    %v1431 = vmul.f32 %v1428, %v1430
    %v1432 = vadd.f32 %v1428, %v1431
    %vm1433 = vweird.f32 %v1427
    %vm1434 = vweird.f32 %v1428
    %vm1435 = vmor %vm1433, %vm1434
    %v1436 = vsel %vm1435, %v1428, %v1432
    %v1437 = vand.u32 2147483647, %v1427
    %vm1438 = vcmp.eq.f32.partialorder %v1437, 8.507059e+37
    %v1439 = vand.u32 %v1427, 2147483648
    %v1440 = vor.u32 1.1754944e-38, %v1439
    %v1441 = vsel %vm1438, %v1440, %v1436
    %v1442 = vmul.f32 1.0, %v1441
    %v1443 = vxor.u32 %v1421, 2147483648
    %v1444 = vmul.f32 %v1443, 1.442695
    %v1445 = vpow.pop %v1444
    %v1446 = vadd.f32 %v1445, 1.0
    %v1447 = vrcp.pop %v1446
    %v1448 = vmul.f32 %v1446, %v1447
    %v1449 = vsub.f32 1.0, %v1448
    %v1450 = vmul.f32 %v1447, %v1449
    %v1451 = vadd.f32 %v1447, %v1450
    %vm1452 = vweird.f32 %v1446
    %vm1453 = vweird.f32 %v1447
    %vm1454 = vmor %vm1452, %vm1453
    %v1455 = vsel %vm1454, %v1447, %v1451
    %v1456 = vand.u32 2147483647, %v1446
    %vm1457 = vcmp.eq.f32.partialorder %v1456, 8.507059e+37
    %v1458 = vand.u32 %v1446, 2147483648
    %v1459 = vor.u32 1.1754944e-38, %v1458
    %v1460 = vsel %vm1457, %v1459, %v1455
    %v1461 = vmul.f32 1.0, %v1460
    %v1462 = vtanh.pop %v1422
    %v1463 = vxor.u32 %v1423, 2147483648
    %v1464 = vmul.f32 %v1463, 1.442695
    %v1465 = vpow.pop %v1464
    %v1466 = vadd.f32 %v1465, 1.0
    %v1467 = vrcp.pop %v1466
    %v1468 = vmul.f32 %v1466, %v1467
    %v1469 = vsub.f32 1.0, %v1468
    %v1470 = vmul.f32 %v1467, %v1469
    %v1471 = vadd.f32 %v1467, %v1470
    %vm1472 = vweird.f32 %v1466
    %vm1473 = vweird.f32 %v1467
    %vm1474 = vmor %vm1472, %vm1473
    %v1475 = vsel %vm1474, %v1467, %v1471
    %v1476 = vand.u32 2147483647, %v1466
    %vm1477 = vcmp.eq.f32.partialorder %v1476, 8.507059e+37
    %v1478 = vand.u32 %v1466, 2147483648
    %v1479 = vor.u32 1.1754944e-38, %v1478
    %v1480 = vsel %vm1477, %v1479, %v1475
    %v1481 = vmul.f32 1.0, %v1480
    %v1482 = vmul.f32 %v1461, %v1357
    %v1483 = vmul.f32 %v1442, %v1462
    %v1484 = vadd.f32 %v1482, %v1483
    %v1485 = vtanh.pop %v1484
    %v1486 = vmul.f32 %v1481, %v1485
    %v1487 = vpack.c.bf16 %v1486, %v1486
    %v1488 = vld [vmem:[#allocation6] sm:$0xf]
    %v1489 = vld [vmem:[#allocation6 + $0x4] sm:$0xf]
    %v1490 = vld [vmem:[#allocation6 + $0x8] sm:$0xf]
    %v1491 = vld [vmem:[#allocation6 + $0xc] sm:$0xf]
    %v1492 = vld [vmem:[#allocation6 + $0x10] sm:$0xf]
    %v1493 = vld [vmem:[#allocation6 + $0x14] sm:$0xf]
    %v1494 = vld [vmem:[#allocation6 + $0x18] sm:$0xf]
    %v1495 = vld [vmem:[#allocation6 + $0x1c] sm:$0xf]
    %v1496 = vld [vmem:[#allocation6 + $0x20] sm:$0xf]
    %v1497 = vld [vmem:[#allocation6 + $0x24] sm:$0xf]
    %v1498 = vld [vmem:[#allocation6 + $0x28] sm:$0xf]
    %v1499 = vld [vmem:[#allocation6 + $0x2c] sm:$0xf]
    %v1500 = vld [vmem:[#allocation6 + $0x30] sm:$0xf]
    %v1501 = vld [vmem:[#allocation6 + $0x34] sm:$0xf]
    %v1502 = vld [vmem:[#allocation6 + $0x38] sm:$0xf]
    %v1503 = vld [vmem:[#allocation6 + $0x3c] sm:$0xf]
    %v1504 = vld [vmem:[%s5] sm:$0x1]
    %v1506 = vperm.slane %v1504, 0
    %v1524 = vunpack.c.l.b16 %v1488
    %v1525 = vunpack.c.l.b16 %v1489
    %v1526 = vunpack.c.l.b16 %v1490
    %v1527 = vunpack.c.l.b16 %v1491
    %v1528 = vunpack.c.l.b16 %v1492
    %v1529 = vunpack.c.l.b16 %v1493
    %v1530 = vunpack.c.l.b16 %v1494
    %v1531 = vunpack.c.l.b16 %v1495
    %v1532 = vunpack.c.l.b16 %v1496
    %v1533 = vunpack.c.l.b16 %v1497
    %v1534 = vunpack.c.l.b16 %v1498
    %v1535 = vunpack.c.l.b16 %v1499
    %v1536 = vunpack.c.l.b16 %v1500
    %v1537 = vunpack.c.l.b16 %v1501
    %v1538 = vunpack.c.l.b16 %v1502
    %v1539 = vunpack.c.l.b16 %v1503
    %v1540 = vpack.c.b16 %v1525, %v1524
    %v1541 = vpack.c.b16 %v1527, %v1526
    %v1542 = vpack.c.b16 %v1529, %v1528
    %v1543 = vpack.c.b16 %v1531, %v1530
    %v1544 = vpack.c.b16 %v1533, %v1532
    %v1545 = vpack.c.b16 %v1535, %v1534
    %v1546 = vpack.c.b16 %v1537, %v1536
    %v1547 = vpack.c.b16 %v1539, %v1538
    %1556 = vmatpush.bf16.msra.mxu0 %v1547
    %1557 = vmatpush.bf16.msra.mxu0 %v1546
    %1558 = vmatpush.bf16.msra.mxu0 %v1545
    %1559 = vmatpush.bf16.msra.mxu0 %v1544
    %1560 = vmatpush.bf16.msra.mxu0 %v1543
    %1561 = vmatpush.bf16.msra.mxu0 %v1542
    %1562 = vmatpush.bf16.msra.mxu0 %v1541
    %1563 = vmatpush.bf16.msra.mxu0 %v1540
    %1564 = vmatmul.bf16.gmra.mxu0 %v1487
    %v1565 = vpop.f32.mrf.mxu0
    %v1566 = vadd.f32 %v1506, %v1565
    %v1567 = vpop.f32.mrf.mxu0
    %1568 = vdwg.mxu0
    %1569 = vst [vmem:[#allocation8] sm:$0xff] %v1566
    // Predicated region
    $region34: #{tpu_custom_call.1} parent=1 // pred_check
      _
    $region35: #{tpu_custom_call.1} parent=1 // pred_check_branch
      %1571 = sbr.rel (0) target = $region37
    $region36: #{tpu_custom_call.1} parent=1 // pred_region
      %1573 = vsyncadd [#allocation5], 0
      %s1575 = sshll.u32 [#allocation8], 4
      %s1576 = int_to_ptr.vmem [resolvable:$true] %s1575
      %s1577 = sshll.u32 %s6, 4
      %s1578 = int_to_ptr.hbm [resolvable:$true] %s1577
      %1580 = dma.vmem_to_hbm [thread:$0]  %s1576, 128, %s1578, [#allocation5]
    $region37: #{tpu_custom_call.1} parent=1 // pred_fallthru
      _
    // Predicated region
    $region38: #{tpu_custom_call.1} parent=1 // pred_check
      _
    $region39: #{tpu_custom_call.1} parent=1 // pred_check_branch
      %1582 = sbr.rel (0) target = $region41
    $region40: #{tpu_custom_call.1} parent=1 // pred_region
      %1584 = dma.done [#allocation5], 128
    $region41: #{tpu_custom_call.1} parent=1 // pred_fallthru
      _
    %1585 = vsyncpa [#allocation4], 1
    %1586 = vsyncpa [#allocation7], 1
    %1587 = vsyncpa [#allocation5], 1

</llo_original>
